<compile_context>
chip_gen: v5e
topology: v5e:2x2
jax: 0.10.0
libtpu: 0.0.40
codegen_flags: <defaults>
</compile_context>

<pallas_src>
import functools

import jax
import jax.numpy as jnp
from jax.experimental import pallas as pl
from jax.experimental.pallas import tpu as pltpu

# bf16 elementwise math for the dominant [TI,TJ,H] message tensors (v6e / v7x).
# On v5e (no bf16 VPU) set this to jnp.float32.
COMPUTE_DTYPE = jnp.bfloat16
BIG = 1e30                         # representable in bf16; edge-mask / min-fill constant
VMEM_LIMIT = 48 * 1024 * 1024      # <= 48 MiB: leaves double-buffer headroom on v7x


# --------------------------------------------------------------------------- kernels

def _encoder_kernel(xr_ref, w_ref, b_ref, h0_ref):
    # fused node + random-feature encoder: single small-K MXU dot (bf16 in, f32 out)
    h0_ref[...] = (jnp.dot(xr_ref[...], w_ref[...],
                           preferred_element_type=jnp.float32) + b_ref[...])


def _pna_layer_kernel(h_src_ref, h_dst_ref, deg_ref, eatt_ref, we_ref, be_ref,
                      wl_ref, bl_ref, bns_ref, bnb_ref,
                      h_out_ref,
                      s_acc, sq_acc, mx_acc, mn_acc, *, res):
    j = pl.program_id(1)
    nj = pl.num_programs(1)

    @pl.when(j == 0)
    def _init():
        s_acc[...] = jnp.zeros_like(s_acc)
        sq_acc[...] = jnp.zeros_like(sq_acc)
        mx_acc[...] = jnp.zeros_like(mx_acc)                    # messages are >= 0
        mn_acc[...] = jnp.full(mn_acc.shape, BIG, jnp.float32)

    ti, tj, fea = eatt_ref.shape
    h = h_out_ref.shape[-1]

    # Edge projection for this (layer, src/dst tile): one small-K MXU dot.
    # The adjacency mask rides along as the last edge feature (adj - 1) with weight
    # row +BIG, so non-edge positions arrive already offset by -BIG.
    e = jnp.dot(eatt_ref[...].reshape(ti * tj, fea), we_ref[...],
                preferred_element_type=jnp.float32)
    e = e.astype(COMPUTE_DTYPE).reshape(ti, tj, h)

    # source-node term; edge-encoder bias folded in here (one [TJ,H] add, not [TI,TJ,H])
    h_src = (h_src_ref[...] + be_ref[...]).astype(COMPUTE_DTYPE)        # [TJ, H]

    pre = e + h_src[None, :, :]                                         # [TI, TJ, H]
    m = jax.nn.relu(pre)                                                # 0 at non-edges

    # running aggregates over source tiles, accumulated in f32 VMEM scratch
    s_acc[...] += jnp.sum(m, axis=1, dtype=jnp.float32)
    sq_acc[...] += jnp.sum(m * m, axis=1, dtype=jnp.float32)
    mx_acc[...] = jnp.maximum(mx_acc[...], jnp.max(m, axis=1).astype(jnp.float32))
    # min over edges only: non-edges are detectable from `pre` (<< -BIG/2),
    # so no adjacency tile / mask broadcast is needed for the fill.
    m_min = jnp.where(pre > (-0.5 * BIG), m, BIG)
    mn_acc[...] = jnp.minimum(mn_acc[...], jnp.min(m_min, axis=1).astype(jnp.float32))

    @pl.when(j == nj - 1)
    def _finalize():
        deg = deg_ref[...]                                   # [TI, 1] f32
        has_nbr = deg > 0.0
        inv_deg = 1.0 / jnp.maximum(deg, 1.0)                # exact reciprocal (tiny)
        mean = s_acc[...] * inv_deg
        # one-pass variance with clamp; exact reciprocal keeps cancellation mild
        var = jnp.maximum(sq_acc[...] * inv_deg - mean * mean, 0.0)
        std = jnp.sqrt(var)
        mx = mx_acc[...]                                     # 0 for degree-0 nodes
        mn = jnp.where(has_nbr, mn_acc[...], 0.0)

        agg = jnp.concatenate([mean, mx, mn, std], axis=-1)  # [TI, 4H] f32
        hid = jnp.dot(agg.astype(jnp.bfloat16), wl_ref[...],
                      preferred_element_type=jnp.float32) + bl_ref[...]
        hid = hid * bns_ref[...] + bnb_ref[...]              # BatchNorm (eval-mode affine)
        hid = jax.nn.relu(hid)
        h_out_ref[...] = (h_dst_ref[...] + hid) if res else hid


def _readout_kernel(pool_ref, h_ref, w_ref, b_ref, o_ref):
    # graph-level add pooling + output linear, kept entirely in f32 (tiny FLOPs)
    pooled = jnp.dot(pool_ref[...], h_ref[...], preferred_element_type=jnp.float32)
    o_ref[...] = jnp.dot(pooled, w_ref[...], preferred_element_type=jnp.float32) + b_ref[...]


# --------------------------------------------------------------------------- wrapper

def gae_forward(params, x, rand_feat, edge_attr_dense, adj, pool_mat, *,
                res=True, tile=None):
    n = x.shape[0]
    n_hid = params["w_node"].shape[1]
    nl_gnn = params["w_l"].shape[0]
    fe = params["w_e"].shape[1]
    b_graphs = pool_mat.shape[0]
    n_out = params["w_out"].shape[1]

    if tile is None:
        tile = 128 if n >= 128 else ((n + 7) // 8) * 8
    n_pad = ((n + tile - 1) // tile) * tile
    pad_n = n_pad - n
    ni = n_pad // tile

    f32, bf16 = jnp.float32, jnp.bfloat16

    # ---- host-side graph preprocessing (done once; cheap vs. per-layer message work) ----
    adj_p = jnp.pad(adj.astype(f32), ((0, pad_n), (0, pad_n)))
    eatt_p = jnp.pad(edge_attr_dense.astype(f32), ((0, pad_n), (0, pad_n), (0, 0)))
    # append (adj - 1) as an extra edge feature; padded rows automatically become non-edges
    eatt_aug = jnp.concatenate([eatt_p, (adj_p - 1.0)[..., None]], axis=-1).astype(bf16)
    fea = fe + 1
    deg = jnp.sum(adj_p, axis=1, keepdims=True).astype(f32)            # [N_pad, 1]
    pool_p = jnp.pad(pool_mat.astype(f32), ((0, 0), (0, pad_n)))       # [B, N_pad]

    # fused node + random encoder inputs / weights
    xr = jnp.pad(jnp.concatenate([x, rand_feat], axis=1), ((0, pad_n), (0, 0))).astype(bf16)
    w_in = jnp.concatenate([params["w_node"], params["w_rand"]], axis=0).astype(bf16)
    b_in = (params["b_node"] + params["b_rand"]).astype(f32)

    # per-layer MXU weights, pre-cast to bf16; mask row (+BIG) appended to the edge weights
    w_e_aug = jnp.concatenate(
        [params["w_e"], jnp.full((nl_gnn, 1, n_hid), BIG, f32)], axis=1).astype(bf16)
    w_l = params["w_l"].astype(bf16)

    # ---- encoder ------------------------------------------------------------------
    h0 = pl.pallas_call(
        _encoder_kernel,
        out_shape=jax.ShapeDtypeStruct((n_pad, n_hid), f32),
        grid=(ni,),
        in_specs=[pl.BlockSpec((tile, xr.shape[1]), lambda i: (i, 0)),
                  pl.BlockSpec(w_in.shape, lambda i: (0, 0)),
                  pl.BlockSpec(b_in.shape, lambda i: (0, 0))],
        out_specs=pl.BlockSpec((tile, n_hid), lambda i: (i, 0)),
        compiler_params=pltpu.CompilerParams(
            dimension_semantics=("parallel",), vmem_limit_bytes=VMEM_LIMIT),
    )(xr, w_in, b_in)

    # ---- RandPNA conv layers: grid over (dest_tile, src_tile), dest axis parallel ---
    layer_cp = pltpu.CompilerParams(
        dimension_semantics=("parallel", "arbitrary"), vmem_limit_bytes=VMEM_LIMIT)
    hfeat = h0
    for layer in range(nl_gnn):
        kern = functools.partial(_pna_layer_kernel, res=res)
        hfeat = pl.pallas_call(
            kern,
            out_shape=jax.ShapeDtypeStruct((n_pad, n_hid), f32),
            grid=(ni, ni),
            in_specs=[
                pl.BlockSpec((tile, n_hid), lambda i, j: (j, 0)),         # h_src
                pl.BlockSpec((tile, n_hid), lambda i, j: (i, 0)),         # h_dst (residual)
                pl.BlockSpec((tile, 1), lambda i, j: (i, 0)),             # deg
                pl.BlockSpec((tile, tile, fea), lambda i, j: (i, j, 0)),  # edge attrs + mask
                pl.BlockSpec((fea, n_hid), lambda i, j: (0, 0)),          # w_e (+mask row)
                pl.BlockSpec((1, n_hid), lambda i, j: (0, 0)),            # b_e
                pl.BlockSpec((4 * n_hid, n_hid), lambda i, j: (0, 0)),    # w_l
                pl.BlockSpec((1, n_hid), lambda i, j: (0, 0)),            # b_l
                pl.BlockSpec((1, n_hid), lambda i, j: (0, 0)),            # bn_scale
                pl.BlockSpec((1, n_hid), lambda i, j: (0, 0)),            # bn_shift
            ],
            out_specs=pl.BlockSpec((tile, n_hid), lambda i, j: (i, 0)),
            scratch_shapes=[pltpu.VMEM((tile, n_hid), f32)] * 4,          # s, sq, max, min
            compiler_params=layer_cp,
        )(hfeat, hfeat, deg, eatt_aug,
          w_e_aug[layer], params["b_e"][layer],
          w_l[layer], params["b_l"][layer],
          params["bn_scale"][layer], params["bn_shift"][layer])

    # ---- graph readout (f32) --------------------------------------------------------
    out = pl.pallas_call(
        _readout_kernel,
        out_shape=jax.ShapeDtypeStruct((b_graphs, n_out), f32),
        grid=(1,),
        in_specs=[pl.BlockSpec(pool_p.shape, lambda i: (0, 0)),
                  pl.BlockSpec((n_pad, n_hid), lambda i: (0, 0)),
                  pl.BlockSpec(params["w_out"].shape, lambda i: (0, 0)),
                  pl.BlockSpec(params["b_out"].shape, lambda i: (0, 0))],
        out_specs=pl.BlockSpec((b_graphs, n_out), lambda i: (0, 0)),
        compiler_params=pltpu.CompilerParams(
            dimension_semantics=("arbitrary",), vmem_limit_bytes=VMEM_LIMIT),
    )(pool_p, hfeat, params["w_out"].astype(f32), params["b_out"].astype(f32))

    return out


# ------------------------------------------------------------------------ parameters

def _glorot(key, shape):
    fan_in, fan_out = shape[-2], shape[-1]
    scale = jnp.sqrt(2.0 / (fan_in + fan_out))
    return (scale * jax.random.normal(key, shape)).astype(jnp.float32)


def init_params(key, node_feat, edge_feat, n_hid, n_out, nl_gnn, embedding_size):
    ks = jax.random.split(key, 5)
    return {
        "w_node": _glorot(ks[0], (node_feat, n_hid)),
        "b_node": jnp.zeros((1, n_hid), jnp.float32),
        "w_rand": _glorot(ks[1], (embedding_size, n_hid)),
        "b_rand": jnp.zeros((1, n_hid), jnp.float32),
        "w_e": _glorot(ks[2], (nl_gnn, edge_feat, n_hid)),
        "b_e": jnp.zeros((nl_gnn, 1, n_hid), jnp.float32),
        "w_l": _glorot(ks[3], (nl_gnn, 4 * n_hid, n_hid)),
        "b_l": jnp.zeros((nl_gnn, 1, n_hid), jnp.float32),
        "bn_scale": jnp.ones((nl_gnn, 1, n_hid), jnp.float32),
        "bn_shift": jnp.zeros((nl_gnn, 1, n_hid), jnp.float32),
        "w_out": _glorot(ks[4], (n_hid, n_out)),
        "b_out": jnp.zeros((1, n_out), jnp.float32),
    }


# ------------------------------------------------------------------------------- main

if __name__ == "__main__":
    node_feat, edge_feat = 7, 4
    n_hid, n_out = 128, 1          # lane-dense hidden width
    nl_gnn = 3
    embedding_size = 8
    n_graphs, nodes_per_graph = 2, 8
    n_nodes = n_graphs * nodes_per_graph

    # bidirectional ring within each graph
    src, dst = [], []
    for g in range(n_graphs):
        base = g * nodes_per_graph
        for i in range(nodes_per_graph):
            nxt = (i + 1) % nodes_per_graph
            src += [base + i, base + nxt]
            dst += [base + nxt, base + i]
    src = jnp.array(src, dtype=jnp.int32)
    dst = jnp.array(dst, dtype=jnp.int32)
    n_edges = int(src.shape[0])

    key = jax.random.PRNGKey(0)
    k1, k2, k3, kp = jax.random.split(key, 4)
    x = jax.random.normal(k1, (n_nodes, node_feat), jnp.float32)
    edge_attr = jax.random.normal(k2, (n_edges, edge_feat), jnp.float32)
    rand_feat = jax.random.uniform(k3, (n_nodes, embedding_size), jnp.float32)

    # densify graph structure (host-side glue)
    adj = jnp.zeros((n_nodes, n_nodes), jnp.float32).at[dst, src].set(1.0)
    eatt_dense = (jnp.zeros((n_nodes, n_nodes, edge_feat), jnp.float32)
                  .at[dst, src].set(edge_attr))
    batch = jnp.repeat(jnp.arange(n_graphs), nodes_per_graph)
    pool_mat = jax.nn.one_hot(batch, n_graphs, dtype=jnp.float32).T    # [B, N]

    params = init_params(kp, node_feat, edge_feat, n_hid, n_out, nl_gnn, embedding_size)

    # tile=8 so that the (dest_tile, src_tile) grid and the running-accumulator
    # (init / finalize) path are exercised even at this toy size.
    fwd = jax.jit(functools.partial(gae_forward, res=True, tile=8))
    out = fwd(params, x, rand_feat, eatt_dense, adj, pool_mat)
    out = jax.block_until_ready(out)
    assert out.shape == (n_graphs, n_out) and out.dtype == jnp.float32
    assert bool(jnp.all(jnp.isfinite(out)))
    print("KERNEL_OK")
</pallas_src>

<mosaic_0001>
module attributes {stable_mosaic.version = 11 : i64} {
  func.func @_readout_kernel(%arg0: i32, %arg1: memref<2x16xf32, #tpu.memory_space<vmem>>, %arg2: memref<16x128xf32, #tpu.memory_space<vmem>>, %arg3: memref<128x1xf32, #tpu.memory_space<vmem>>, %arg4: memref<1x1xf32, #tpu.memory_space<vmem>>, %arg5: memref<2x1xf32, #tpu.memory_space<vmem>>) attributes {dimension_semantics = [#tpu.dimension_semantics<arbitrary>], iteration_bounds = array<i64: 1>, scalar_prefetch = 0 : i64, scratch_operands = 0 : i64, tpu.core_type = #tpu.core_type<tc>, window_params = [{pipeline_mode = #tpu.pipeline_mode<synchronous>, transform_indices = @transform_0, window_bounds = array<i64: 2, 16>}, {pipeline_mode = #tpu.pipeline_mode<synchronous>, transform_indices = @transform_1, window_bounds = array<i64: 16, 128>}, {pipeline_mode = #tpu.pipeline_mode<synchronous>, transform_indices = @transform_2, window_bounds = array<i64: 128, 1>}, {pipeline_mode = #tpu.pipeline_mode<synchronous>, transform_indices = @transform_3, window_bounds = array<i64: 1, 1>}, {pipeline_mode = #tpu.pipeline_mode<synchronous>, transform_indices = @transform_4, window_bounds = array<i64: 2, 1>}]} {
    %c0 = arith.constant 0 : index
    %c0_0 = arith.constant 0 : index
    %0 = vector.load %arg1[%c0, %c0_0] : memref<2x16xf32, #tpu.memory_space<vmem>>, vector<2x16xf32>
    %c0_1 = arith.constant 0 : index
    %c0_2 = arith.constant 0 : index
    %1 = vector.load %arg2[%c0_1, %c0_2] : memref<16x128xf32, #tpu.memory_space<vmem>>, vector<16x128xf32>
    %cst = arith.constant dense<0.000000e+00> : vector<2x128xf32>
    %2 = tpu.matmul %0, %1, %cst {dimension_numbers = #tpu.dot_dimension_numbers<[1], [0], [0], [1], [0, 0, 1, 1], [], []>} : vector<2x16xf32>, vector<16x128xf32>, vector<2x128xf32> -> vector<2x128xf32>
    %c0_3 = arith.constant 0 : index
    %c0_4 = arith.constant 0 : index
    %3 = vector.load %arg3[%c0_3, %c0_4] : memref<128x1xf32, #tpu.memory_space<vmem>>, vector<128x1xf32>
    %cst_5 = arith.constant dense<0.000000e+00> : vector<2x1xf32>
    %4 = tpu.matmul %2, %3, %cst_5 {dimension_numbers = #tpu.dot_dimension_numbers<[1], [0], [0], [1], [0, 0, 1, 1], [], []>} : vector<2x128xf32>, vector<128x1xf32>, vector<2x1xf32> -> vector<2x1xf32>
    %c0_6 = arith.constant 0 : index
    %c0_7 = arith.constant 0 : index
    %5 = vector.load %arg4[%c0_6, %c0_7] : memref<1x1xf32, #tpu.memory_space<vmem>>, vector<1x1xf32>
    %6 = vector.broadcast %5 : vector<1x1xf32> to vector<2x1xf32>
    %7 = arith.addf %4, %6 : vector<2x1xf32>
    %c0_8 = arith.constant 0 : index
    %c0_9 = arith.constant 0 : index
    %8 = vector.load %arg5[%c0_8, %c0_9] : memref<2x1xf32, #tpu.memory_space<vmem>>, vector<2x1xf32>
    tpu.vector_store %arg5[%c0_8, %c0_9], %7 {strides = array<i32>} : memref<2x1xf32, #tpu.memory_space<vmem>>, vector<2x1xf32>,
    return
  }
  func.func @transform_0(%arg0: i32) -> (i32, i32) {
    %c0_i32 = arith.constant 0 : i32
    %c0_i32_0 = arith.constant 0 : i32
    %c0_i32_1 = arith.constant 0 : i32
    return %c0_i32, %c0_i32_0 : i32, i32
  }
  func.func @transform_1(%arg0: i32) -> (i32, i32) {
    %c0_i32 = arith.constant 0 : i32
    %c0_i32_0 = arith.constant 0 : i32
    %c0_i32_1 = arith.constant 0 : i32
    return %c0_i32, %c0_i32_0 : i32, i32
  }
  func.func @transform_2(%arg0: i32) -> (i32, i32) {
    %c0_i32 = arith.constant 0 : i32
    %c0_i32_0 = arith.constant 0 : i32
    %c0_i32_1 = arith.constant 0 : i32
    return %c0_i32, %c0_i32_0 : i32, i32
  }
  func.func @transform_3(%arg0: i32) -> (i32, i32) {
    %c0_i32 = arith.constant 0 : i32
    %c0_i32_0 = arith.constant 0 : i32
    %c0_i32_1 = arith.constant 0 : i32
    return %c0_i32, %c0_i32_0 : i32, i32
  }
  func.func @transform_4(%arg0: i32) -> (i32, i32) {
    %c0_i32 = arith.constant 0 : i32
    %c0_i32_0 = arith.constant 0 : i32
    %c0_i32_1 = arith.constant 0 : i32
    return %c0_i32, %c0_i32_0 : i32, i32
  }
}

module attributes {stable_mosaic.version = 11 : i64} {
  func.func @_encoder_kernel(%arg0: i32, %arg1: memref<8x15xbf16, #tpu.memory_space<vmem>>, %arg2: memref<15x128xbf16, #tpu.memory_space<vmem>>, %arg3: memref<1x128xf32, #tpu.memory_space<vmem>>, %arg4: memref<8x128xf32, #tpu.memory_space<vmem>>) attributes {dimension_semantics = [#tpu.dimension_semantics<parallel>], iteration_bounds = array<i64: 2>, scalar_prefetch = 0 : i64, scratch_operands = 0 : i64, tpu.core_type = #tpu.core_type<tc>, window_params = [{transform_indices = @transform_0, window_bounds = array<i64: 8, 15>}, {pipeline_mode = #tpu.pipeline_mode<synchronous>, transform_indices = @transform_1, window_bounds = array<i64: 15, 128>}, {pipeline_mode = #tpu.pipeline_mode<synchronous>, transform_indices = @transform_2, window_bounds = array<i64: 1, 128>}, {transform_indices = @transform_3, window_bounds = array<i64: 8, 128>}]} {
    %c0 = arith.constant 0 : index
    %c0_0 = arith.constant 0 : index
    %0 = vector.load %arg1[%c0, %c0_0] : memref<8x15xbf16, #tpu.memory_space<vmem>>, vector<8x15xbf16>
    %c0_1 = arith.constant 0 : index
    %c0_2 = arith.constant 0 : index
    %1 = vector.load %arg2[%c0_1, %c0_2] : memref<15x128xbf16, #tpu.memory_space<vmem>>, vector<15x128xbf16>
    %cst = arith.constant dense<0.000000e+00> : vector<8x128xf32>
    %2 = tpu.matmul %0, %1, %cst {dimension_numbers = #tpu.dot_dimension_numbers<[1], [0], [0], [1], [0, 0, 1, 1], [], []>} : vector<8x15xbf16>, vector<15x128xbf16>, vector<8x128xf32> -> vector<8x128xf32>
    %c0_3 = arith.constant 0 : index
    %c0_4 = arith.constant 0 : index
    %3 = vector.load %arg3[%c0_3, %c0_4] : memref<1x128xf32, #tpu.memory_space<vmem>>, vector<1x128xf32>
    %4 = vector.broadcast %3 : vector<1x128xf32> to vector<8x128xf32>
    %5 = arith.addf %2, %4 : vector<8x128xf32>
    %c0_5 = arith.constant 0 : index
    %c0_6 = arith.constant 0 : index
    %6 = vector.load %arg4[%c0_5, %c0_6] : memref<8x128xf32, #tpu.memory_space<vmem>>, vector<8x128xf32>
    tpu.vector_store %arg4[%c0_5, %c0_6], %5 {strides = array<i32>} : memref<8x128xf32, #tpu.memory_space<vmem>>, vector<8x128xf32>,
    return
  }
  func.func @transform_0(%arg0: i32) -> (i32, i32) {
    %c0_i32 = arith.constant 0 : i32
    %c0_i32_0 = arith.constant 0 : i32
    return %arg0, %c0_i32 : i32, i32
  }
  func.func @transform_1(%arg0: i32) -> (i32, i32) {
    %c0_i32 = arith.constant 0 : i32
    %c0_i32_0 = arith.constant 0 : i32
    %c0_i32_1 = arith.constant 0 : i32
    return %c0_i32, %c0_i32_0 : i32, i32
  }
  func.func @transform_2(%arg0: i32) -> (i32, i32) {
    %c0_i32 = arith.constant 0 : i32
    %c0_i32_0 = arith.constant 0 : i32
    %c0_i32_1 = arith.constant 0 : i32
    return %c0_i32, %c0_i32_0 : i32, i32
  }
  func.func @transform_3(%arg0: i32) -> (i32, i32) {
    %c0_i32 = arith.constant 0 : i32
    %c0_i32_0 = arith.constant 0 : i32
    return %arg0, %c0_i32 : i32, i32
  }
}

module attributes {stable_mosaic.version = 11 : i64} {
  func.func @_pna_layer_kernel(%arg0: i32, %arg1: i32, %arg2: memref<8x128xf32, #tpu.memory_space<vmem>>, %arg3: memref<8x128xf32, #tpu.memory_space<vmem>>, %arg4: memref<8x1xf32, #tpu.memory_space<vmem>>, %arg5: memref<8x8x5xbf16, #tpu.memory_space<vmem>>, %arg6: memref<5x128xbf16, #tpu.memory_space<vmem>>, %arg7: memref<1x128xf32, #tpu.memory_space<vmem>>, %arg8: memref<512x128xbf16, #tpu.memory_space<vmem>>, %arg9: memref<1x128xf32, #tpu.memory_space<vmem>>, %arg10: memref<1x128xf32, #tpu.memory_space<vmem>>, %arg11: memref<1x128xf32, #tpu.memory_space<vmem>>, %arg12: memref<8x128xf32, #tpu.memory_space<vmem>>, %arg13: memref<8x128xf32, #tpu.memory_space<vmem>>, %arg14: memref<8x128xf32, #tpu.memory_space<vmem>>, %arg15: memref<8x128xf32, #tpu.memory_space<vmem>>, %arg16: memref<8x128xf32, #tpu.memory_space<vmem>>) attributes {dimension_semantics = [#tpu.dimension_semantics<parallel>, #tpu.dimension_semantics<arbitrary>], iteration_bounds = array<i64: 2, 2>, scalar_prefetch = 0 : i64, scratch_operands = 4 : i64, tpu.core_type = #tpu.core_type<tc>, window_params = [{transform_indices = @transform_0, window_bounds = array<i64: 8, 128>}, {transform_indices = @transform_1, window_bounds = array<i64: 8, 128>}, {transform_indices = @transform_2, window_bounds = array<i64: 8, 1>}, {transform_indices = @transform_3, window_bounds = array<i64: 8, 8, 5>}, {pipeline_mode = #tpu.pipeline_mode<synchronous>, transform_indices = @transform_4, window_bounds = array<i64: 5, 128>}, {pipeline_mode = #tpu.pipeline_mode<synchronous>, transform_indices = @transform_5, window_bounds = array<i64: 1, 128>}, {pipeline_mode = #tpu.pipeline_mode<synchronous>, transform_indices = @transform_6, window_bounds = array<i64: 512, 128>}, {pipeline_mode = #tpu.pipeline_mode<synchronous>, transform_indices = @transform_7, window_bounds = array<i64: 1, 128>}, {pipeline_mode = #tpu.pipeline_mode<synchronous>, transform_indices = @transform_8, window_bounds = array<i64: 1, 128>}, {pipeline_mode = #tpu.pipeline_mode<synchronous>, transform_indices = @transform_9, window_bounds = array<i64: 1, 128>}, {transform_indices = @transform_10, window_bounds = array<i64: 8, 128>}]} {
    %c0_i32 = arith.constant 0 : i32
    %0 = arith.cmpi eq, %arg1, %c0_i32 : i32
    %1 = arith.extui %0 : i1 to i32
    %c0_i32_0 = arith.constant 0 : i32
    %2 = arith.cmpi ne, %1, %c0_i32_0 : i32
    scf.if %2 {
      %cst_33 = arith.constant 0.000000e+00 : f32
      %48 = vector.broadcast %cst_33 : f32 to vector<8x128xf32>
      %c0_34 = arith.constant 0 : index
      %c0_35 = arith.constant 0 : index
      %49 = vector.load %arg13[%c0_34, %c0_35] : memref<8x128xf32, #tpu.memory_space<vmem>>, vector<8x128xf32>
      tpu.vector_store %arg13[%c0_34, %c0_35], %48 {strides = array<i32>} : memref<8x128xf32, #tpu.memory_space<vmem>>, vector<8x128xf32>,
      %cst_36 = arith.constant 0.000000e+00 : f32
      %50 = vector.broadcast %cst_36 : f32 to vector<8x128xf32>
      %c0_37 = arith.constant 0 : index
      %c0_38 = arith.constant 0 : index
      %51 = vector.load %arg14[%c0_37, %c0_38] : memref<8x128xf32, #tpu.memory_space<vmem>>, vector<8x128xf32>
      tpu.vector_store %arg14[%c0_37, %c0_38], %50 {strides = array<i32>} : memref<8x128xf32, #tpu.memory_space<vmem>>, vector<8x128xf32>,
      %cst_39 = arith.constant 0.000000e+00 : f32
      %52 = vector.broadcast %cst_39 : f32 to vector<8x128xf32>
      %c0_40 = arith.constant 0 : index
      %c0_41 = arith.constant 0 : index
      %53 = vector.load %arg15[%c0_40, %c0_41] : memref<8x128xf32, #tpu.memory_space<vmem>>, vector<8x128xf32>
      tpu.vector_store %arg15[%c0_40, %c0_41], %52 {strides = array<i32>} : memref<8x128xf32, #tpu.memory_space<vmem>>, vector<8x128xf32>,
      %cst_42 = arith.constant 1.000000e+30 : f32
      %54 = vector.broadcast %cst_42 : f32 to vector<8x128xf32>
      %c0_43 = arith.constant 0 : index
      %c0_44 = arith.constant 0 : index
      %55 = vector.load %arg16[%c0_43, %c0_44] : memref<8x128xf32, #tpu.memory_space<vmem>>, vector<8x128xf32>
      tpu.vector_store %arg16[%c0_43, %c0_44], %54 {strides = array<i32>} : memref<8x128xf32, #tpu.memory_space<vmem>>, vector<8x128xf32>,
    } else {
    }
    %c0 = arith.constant 0 : index
    %c0_1 = arith.constant 0 : index
    %c0_2 = arith.constant 0 : index
    %3 = vector.load %arg5[%c0, %c0_1, %c0_2] : memref<8x8x5xbf16, #tpu.memory_space<vmem>>, vector<8x8x5xbf16>
    %4 = vector.shape_cast %3 : vector<8x8x5xbf16> to vector<64x5xbf16>
    %c0_3 = arith.constant 0 : index
    %c0_4 = arith.constant 0 : index
    %5 = vector.load %arg6[%c0_3, %c0_4] : memref<5x128xbf16, #tpu.memory_space<vmem>>, vector<5x128xbf16>
    %cst = arith.constant dense<0.000000e+00> : vector<64x128xf32>
    %6 = tpu.matmul %4, %5, %cst {dimension_numbers = #tpu.dot_dimension_numbers<[1], [0], [0], [1], [0, 0, 1, 1], [], []>} : vector<64x5xbf16>, vector<5x128xbf16>, vector<64x128xf32> -> vector<64x128xf32>
    %7 = arith.truncf %6 : vector<64x128xf32> to vector<64x128xbf16>
    %8 = vector.shape_cast %7 : vector<64x128xbf16> to vector<8x8x128xbf16>
    %c0_5 = arith.constant 0 : index
    %c0_6 = arith.constant 0 : index
    %9 = vector.load %arg2[%c0_5, %c0_6] : memref<8x128xf32, #tpu.memory_space<vmem>>, vector<8x128xf32>
    %c0_7 = arith.constant 0 : index
    %c0_8 = arith.constant 0 : index
    %10 = vector.load %arg7[%c0_7, %c0_8] : memref<1x128xf32, #tpu.memory_space<vmem>>, vector<1x128xf32>
    %11 = vector.broadcast %10 : vector<1x128xf32> to vector<8x128xf32>
    %12 = arith.addf %9, %11 : vector<8x128xf32>
    %13 = arith.truncf %12 : vector<8x128xf32> to vector<8x128xbf16>
    %14 = vector.shape_cast %13 : vector<8x128xbf16> to vector<1x8x128xbf16>
    %15 = vector.broadcast %14 : vector<1x8x128xbf16> to vector<8x8x128xbf16>
    %16 = arith.addf %8, %15 : vector<8x8x128xbf16>
    %cst_9 = arith.constant 0.000000e+00 : bf16
    %17 = vector.broadcast %cst_9 : bf16 to vector<8x8x128xbf16>
    %18 = arith.maximumf %16, %17 : vector<8x8x128xbf16>
    %c0_10 = arith.constant 0 : index
    %c0_11 = arith.constant 0 : index
    %19 = vector.load %arg13[%c0_10, %c0_11] : memref<8x128xf32, #tpu.memory_space<vmem>>, vector<8x128xf32>
    %20 = arith.extf %18 : vector<8x8x128xbf16> to vector<8x8x128xf32>
    %cst_12 = arith.constant dense<0.000000e+00> : vector<8x128xf32>
    %21 = vector.multi_reduction <add>, %20, %cst_12 [1] : vector<8x8x128xf32> to vector<8x128xf32>
    %22 = arith.addf %19, %21 : vector<8x128xf32>
    %c0_13 = arith.constant 0 : index
    %c0_14 = arith.constant 0 : index
    %23 = vector.load %arg13[%c0_13, %c0_14] : memref<8x128xf32, #tpu.memory_space<vmem>>, vector<8x128xf32>
    tpu.vector_store %arg13[%c0_13, %c0_14], %22 {strides = array<i32>} : memref<8x128xf32, #tpu.memory_space<vmem>>, vector<8x128xf32>,
    %c0_15 = arith.constant 0 : index
    %c0_16 = arith.constant 0 : index
    %24 = vector.load %arg14[%c0_15, %c0_16] : memref<8x128xf32, #tpu.memory_space<vmem>>, vector<8x128xf32>
    %25 = arith.mulf %18, %18 : vector<8x8x128xbf16>
    %26 = arith.extf %25 : vector<8x8x128xbf16> to vector<8x8x128xf32>
    %cst_17 = arith.constant dense<0.000000e+00> : vector<8x128xf32>
    %27 = vector.multi_reduction <add>, %26, %cst_17 [1] : vector<8x8x128xf32> to vector<8x128xf32>
    %28 = arith.addf %24, %27 : vector<8x128xf32>
    %c0_18 = arith.constant 0 : index
    %c0_19 = arith.constant 0 : index
    %29 = vector.load %arg14[%c0_18, %c0_19] : memref<8x128xf32, #tpu.memory_space<vmem>>, vector<8x128xf32>
    tpu.vector_store %arg14[%c0_18, %c0_19], %28 {strides = array<i32>} : memref<8x128xf32, #tpu.memory_space<vmem>>, vector<8x128xf32>,
    %c0_20 = arith.constant 0 : index
    %c0_21 = arith.constant 0 : index
    %30 = vector.load %arg15[%c0_20, %c0_21] : memref<8x128xf32, #tpu.memory_space<vmem>>, vector<8x128xf32>
    %cst_22 = arith.constant dense<0xFF80> : vector<8x128xbf16>
    %31 = vector.multi_reduction <maximumf>, %18, %cst_22 [1] : vector<8x8x128xbf16> to vector<8x128xbf16>
    %32 = arith.extf %31 : vector<8x128xbf16> to vector<8x128xf32>
    %33 = arith.maximumf %30, %32 : vector<8x128xf32>
    %c0_23 = arith.constant 0 : index
    %c0_24 = arith.constant 0 : index
    %34 = vector.load %arg15[%c0_23, %c0_24] : memref<8x128xf32, #tpu.memory_space<vmem>>, vector<8x128xf32>
    tpu.vector_store %arg15[%c0_23, %c0_24], %33 {strides = array<i32>} : memref<8x128xf32, #tpu.memory_space<vmem>>, vector<8x128xf32>,
    %cst_25 = arith.constant -5.001280e+29 : bf16
    %35 = vector.broadcast %cst_25 : bf16 to vector<8x8x128xbf16>
    %36 = arith.cmpf ogt, %16, %35 : vector<8x8x128xbf16>
    %cst_26 = arith.constant 1.000000e+30 : f32
    %37 = arith.truncf %cst_26 : f32 to bf16
    %38 = vector.broadcast %37 : bf16 to vector<8x8x128xbf16>
    %39 = arith.select %36, %18, %38 : vector<8x8x128xi1>, vector<8x8x128xbf16>
    %c0_27 = arith.constant 0 : index
    %c0_28 = arith.constant 0 : index
    %40 = vector.load %arg16[%c0_27, %c0_28] : memref<8x128xf32, #tpu.memory_space<vmem>>, vector<8x128xf32>
    %cst_29 = arith.constant dense<0x7F80> : vector<8x128xbf16>
    %41 = vector.multi_reduction <minimumf>, %39, %cst_29 [1] : vector<8x8x128xbf16> to vector<8x128xbf16>
    %42 = arith.extf %41 : vector<8x128xbf16> to vector<8x128xf32>
    %43 = arith.minimumf %40, %42 : vector<8x128xf32>
    %c0_30 = arith.constant 0 : index
    %c0_31 = arith.constant 0 : index
    %44 = vector.load %arg16[%c0_30, %c0_31] : memref<8x128xf32, #tpu.memory_space<vmem>>, vector<8x128xf32>
    tpu.vector_store %arg16[%c0_30, %c0_31], %43 {strides = array<i32>} : memref<8x128xf32, #tpu.memory_space<vmem>>, vector<8x128xf32>,
    %c1_i32 = arith.constant 1 : i32
    %45 = arith.cmpi eq, %arg1, %c1_i32 : i32
    %46 = arith.extui %45 : i1 to i32
    %c0_i32_32 = arith.constant 0 : i32
    %47 = arith.cmpi ne, %46, %c0_i32_32 : i32
    scf.if %47 {
      %c0_33 = arith.constant 0 : index
      %c0_34 = arith.constant 0 : index
      %48 = vector.load %arg4[%c0_33, %c0_34] : memref<8x1xf32, #tpu.memory_space<vmem>>, vector<8x1xf32>
      %cst_35 = arith.constant 0.000000e+00 : f32
      %49 = vector.broadcast %cst_35 : f32 to vector<8x1xf32>
      %50 = arith.cmpf ogt, %48, %49 : vector<8x1xf32>
      %cst_36 = arith.constant 1.000000e+00 : f32
      %51 = vector.broadcast %cst_36 : f32 to vector<8x1xf32>
      %52 = arith.maximumf %48, %51 : vector<8x1xf32>
      %cst_37 = arith.constant 1.000000e+00 : f32
      %53 = vector.broadcast %cst_37 : f32 to vector<8x1xf32>
      %54 = arith.divf %53, %52 : vector<8x1xf32>
      %c0_38 = arith.constant 0 : index
      %c0_39 = arith.constant 0 : index
      %55 = vector.load %arg13[%c0_38, %c0_39] : memref<8x128xf32, #tpu.memory_space<vmem>>, vector<8x128xf32>
      %56 = vector.broadcast %54 : vector<8x1xf32> to vector<8x128xf32>
      %57 = arith.mulf %55, %56 : vector<8x128xf32>
      %c0_40 = arith.constant 0 : index
      %c0_41 = arith.constant 0 : index
      %58 = vector.load %arg14[%c0_40, %c0_41] : memref<8x128xf32, #tpu.memory_space<vmem>>, vector<8x128xf32>
      %59 = vector.broadcast %54 : vector<8x1xf32> to vector<8x128xf32>
      %60 = arith.mulf %58, %59 : vector<8x128xf32>
      %61 = arith.mulf %57, %57 : vector<8x128xf32>
      %62 = arith.subf %60, %61 : vector<8x128xf32>
      %cst_42 = arith.constant 0.000000e+00 : f32
      %63 = vector.broadcast %cst_42 : f32 to vector<8x128xf32>
      %64 = arith.maximumf %62, %63 : vector<8x128xf32>
      %65 = math.sqrt %64 : vector<8x128xf32>
      %c0_43 = arith.constant 0 : index
      %c0_44 = arith.constant 0 : index
      %66 = vector.load %arg15[%c0_43, %c0_44] : memref<8x128xf32, #tpu.memory_space<vmem>>, vector<8x128xf32>
      %c0_45 = arith.constant 0 : index
      %c0_46 = arith.constant 0 : index
      %67 = vector.load %arg16[%c0_45, %c0_46] : memref<8x128xf32, #tpu.memory_space<vmem>>, vector<8x128xf32>
      %cst_47 = arith.constant 0.000000e+00 : f32
      %68 = vector.shape_cast %50 : vector<8x1xi1> to vector<8x1xi1>
      %69 = vector.broadcast %68 : vector<8x1xi1> to vector<8x128xi1>
      %70 = vector.broadcast %cst_47 : f32 to vector<8x128xf32>
      %71 = arith.select %69, %67, %70 : vector<8x128xi1>, vector<8x128xf32>
      %72 = tpu.concatenate %57, %66, %71, %65 in 1 : vector<8x128xf32>, vector<8x128xf32>, vector<8x128xf32>, vector<8x128xf32> -> vector<8x512xf32>
      %73 = arith.truncf %72 : vector<8x512xf32> to vector<8x512xbf16>
      %c0_48 = arith.constant 0 : index
      %c0_49 = arith.constant 0 : index
      %74 = vector.load %arg8[%c0_48, %c0_49] : memref<512x128xbf16, #tpu.memory_space<vmem>>, vector<512x128xbf16>
      %cst_50 = arith.constant dense<0.000000e+00> : vector<8x128xf32>
      %75 = tpu.matmul %73, %74, %cst_50 {dimension_numbers = #tpu.dot_dimension_numbers<[1], [0], [0], [1], [0, 0, 1, 1], [], []>} : vector<8x512xbf16>, vector<512x128xbf16>, vector<8x128xf32> -> vector<8x128xf32>
      %c0_51 = arith.constant 0 : index
      %c0_52 = arith.constant 0 : index
      %76 = vector.load %arg9[%c0_51, %c0_52] : memref<1x128xf32, #tpu.memory_space<vmem>>, vector<1x128xf32>
      %77 = vector.broadcast %76 : vector<1x128xf32> to vector<8x128xf32>
      %78 = arith.addf %75, %77 : vector<8x128xf32>
      %c0_53 = arith.constant 0 : index
      %c0_54 = arith.constant 0 : index
      %79 = vector.load %arg10[%c0_53, %c0_54] : memref<1x128xf32, #tpu.memory_space<vmem>>, vector<1x128xf32>
      %80 = vector.broadcast %79 : vector<1x128xf32> to vector<8x128xf32>
      %81 = arith.mulf %78, %80 : vector<8x128xf32>
      %c0_55 = arith.constant 0 : index
      %c0_56 = arith.constant 0 : index
      %82 = vector.load %arg11[%c0_55, %c0_56] : memref<1x128xf32, #tpu.memory_space<vmem>>, vector<1x128xf32>
      %83 = vector.broadcast %82 : vector<1x128xf32> to vector<8x128xf32>
      %84 = arith.addf %81, %83 : vector<8x128xf32>
      %cst_57 = arith.constant 0.000000e+00 : f32
      %85 = vector.broadcast %cst_57 : f32 to vector<8x128xf32>
      %86 = arith.maximumf %84, %85 : vector<8x128xf32>
      %c0_58 = arith.constant 0 : index
      %c0_59 = arith.constant 0 : index
      %87 = vector.load %arg3[%c0_58, %c0_59] : memref<8x128xf32, #tpu.memory_space<vmem>>, vector<8x128xf32>
      %88 = arith.addf %87, %86 : vector<8x128xf32>
      %c0_60 = arith.constant 0 : index
      %c0_61 = arith.constant 0 : index
      %89 = vector.load %arg12[%c0_60, %c0_61] : memref<8x128xf32, #tpu.memory_space<vmem>>, vector<8x128xf32>
      tpu.vector_store %arg12[%c0_60, %c0_61], %88 {strides = array<i32>} : memref<8x128xf32, #tpu.memory_space<vmem>>, vector<8x128xf32>,
    } else {
    }
    return
  }
  func.func @transform_0(%arg0: i32, %arg1: i32) -> (i32, i32) {
    %c0_i32 = arith.constant 0 : i32
    %c0_i32_0 = arith.constant 0 : i32
    return %arg1, %c0_i32 : i32, i32
  }
  func.func @transform_1(%arg0: i32, %arg1: i32) -> (i32, i32) {
    %c0_i32 = arith.constant 0 : i32
    %c0_i32_0 = arith.constant 0 : i32
    return %arg0, %c0_i32 : i32, i32
  }
  func.func @transform_2(%arg0: i32, %arg1: i32) -> (i32, i32) {
    %c0_i32 = arith.constant 0 : i32
    %c0_i32_0 = arith.constant 0 : i32
    return %arg0, %c0_i32 : i32, i32
  }
  func.func @transform_3(%arg0: i32, %arg1: i32) -> (i32, i32, i32) {
    %c0_i32 = arith.constant 0 : i32
    %c0_i32_0 = arith.constant 0 : i32
    return %arg0, %arg1, %c0_i32 : i32, i32, i32
  }
  func.func @transform_4(%arg0: i32, %arg1: i32) -> (i32, i32) {
    %c0_i32 = arith.constant 0 : i32
    %c0_i32_0 = arith.constant 0 : i32
    %c0_i32_1 = arith.constant 0 : i32
    return %c0_i32, %c0_i32_0 : i32, i32
  }
  func.func @transform_5(%arg0: i32, %arg1: i32) -> (i32, i32) {
    %c0_i32 = arith.constant 0 : i32
    %c0_i32_0 = arith.constant 0 : i32
    %c0_i32_1 = arith.constant 0 : i32
    return %c0_i32, %c0_i32_0 : i32, i32
  }
  func.func @transform_6(%arg0: i32, %arg1: i32) -> (i32, i32) {
    %c0_i32 = arith.constant 0 : i32
    %c0_i32_0 = arith.constant 0 : i32
    %c0_i32_1 = arith.constant 0 : i32
    return %c0_i32, %c0_i32_0 : i32, i32
  }
  func.func @transform_7(%arg0: i32, %arg1: i32) -> (i32, i32) {
    %c0_i32 = arith.constant 0 : i32
    %c0_i32_0 = arith.constant 0 : i32
    %c0_i32_1 = arith.constant 0 : i32
    return %c0_i32, %c0_i32_0 : i32, i32
  }
  func.func @transform_8(%arg0: i32, %arg1: i32) -> (i32, i32) {
    %c0_i32 = arith.constant 0 : i32
    %c0_i32_0 = arith.constant 0 : i32
    %c0_i32_1 = arith.constant 0 : i32
    return %c0_i32, %c0_i32_0 : i32, i32
  }
  func.func @transform_9(%arg0: i32, %arg1: i32) -> (i32, i32) {
    %c0_i32 = arith.constant 0 : i32
    %c0_i32_0 = arith.constant 0 : i32
    %c0_i32_1 = arith.constant 0 : i32
    return %c0_i32, %c0_i32_0 : i32, i32
  }
  func.func @transform_10(%arg0: i32, %arg1: i32) -> (i32, i32) {
    %c0_i32 = arith.constant 0 : i32
    %c0_i32_0 = arith.constant 0 : i32
    return %arg0, %c0_i32 : i32, i32
  }
}

</mosaic_0001>

<llo_original>
// kernel: gae_forward.5
$region0: #{gae_forward.5}
  #allocation0 [shape = 'u32[]', space=smem, size = 0x4, offset = 0x4, fixed_abs, tag = 'smem constant byte address 0x4 - core index']
  #allocation1 [shape = 'u32[72,128]{1,0:T(1,128)}', space=vmem, size = 0x9000, scoped, tag = 'internal scratch']
  %s0 = inlined_call_operand.vmem [shape: bf16[16,15], index: 0, kind: input, shape index: {}]
  %s1 = inlined_call_operand.vmem [shape: bf16[15,128], index: 1, kind: input, shape index: {}]
  %s2 = inlined_call_operand.vmem [shape: f32[1,128], index: 2, kind: input, shape index: {}]
  %s3 = inlined_call_operand.vmem [shape: f32[16,128], index: 3, kind: output, shape index: {}]
  %s4 = sld [smem:[#allocation0]]
  $region45: #{gae_forward.5} parent=0
    _
  %s6 = ssub.s32 1, %s4
  %s7 = scalar_select 0, %s6, %s4
  loop: start=0, step=1, limit=4
  $region2: #{gae_forward.5} parent=0 // loop_pre_header
    _
  $region3: #{gae_forward.5} parent=0 // loop_header
    %s9 = sphi 0, %s13
    %p10 = scmp.ge.s32.totalorder %s9, 4
    %s19 = sphi 0, %s21
    %s22 = sphi 0, %s19
    %s23 = sphi 0, %s22
    %s39 = sphi 0, %s23
    %s43 = sphi 0, %s43
    %s45 = sphi 0, %s43
    %s46 = sphi 0, %s45
    %s60 = sphi 0, %s46
    %s64 = sphi 0, %s64
    %s66 = sphi 0, %s64
    %s67 = sphi 0, %s66
    %s81 = sphi 0, %s67
    %s87 = sphi 0, %s89
    %s90 = sphi 0, %s87
    %s91 = sphi 0, %s90
    %s107 = sphi 0, %s91
  $region4: #{gae_forward.5} parent=0 // loop_header_branch
    %12 = sbr.rel (%p10) target = $region8
  $region5: #{gae_forward.5} parent=0 // loop_body
    %s14 = ssub.s32 %s9, 1
    %s15 = ssub.s32 %s9, 2
    %s16 = sadd.s32 %s9, 1
    %s17 = ssub.s32 %s9, %s16
    %p18 = scmp.eq.s32.totalorder %s17, 0
    %s20 = sadd.s32 %s19, 1
    %s21 = scalar_select %p18, %s19, %s20
    %p24 = pneg %p18
    %p25 = scmp.eq.s32.totalorder %s9, 1
    %p26 = por %p24, %p25
    %p27 = scmp.ne.s32.totalorder %s19, %s22
    %p28 = scmp.eq.s32.totalorder %s9, 0
    %p29 = por %p27, %p28
    %p30 = scmp.ne.s32.totalorder %s19, %s22
    %p31 = scmp.eq.s32.totalorder %s14, 1
    %p32 = por %p30, %p31
    %p33 = scmp.ne.s32.totalorder %s22, %s23
    %p34 = scmp.eq.s32.totalorder %s14, 0
    %p35 = por %p33, %p34
    %p36 = scmp.ne.s32.totalorder %s22, %s23
    %p37 = scmp.eq.s32.totalorder %s15, 1
    %p38 = por %p36, %p37
    %p40 = scmp.ne.s32.totalorder %s23, %s39
    %p41 = scmp.eq.s32.totalorder %s15, 0
    %p42 = por %p40, %p41
    %s44 = sadd.s32 %s43, 1
    %p47 = scmp.eq.s32.totalorder %s9, 1
    %p48 = scmp.ne.s32.totalorder %s43, %s45
    %p49 = scmp.eq.s32.totalorder %s9, 0
    %p50 = por %p48, %p49
    %p51 = scmp.ne.s32.totalorder %s43, %s45
    %p52 = scmp.eq.s32.totalorder %s14, 1
    %p53 = por %p51, %p52
    %p54 = scmp.ne.s32.totalorder %s45, %s46
    %p55 = scmp.eq.s32.totalorder %s14, 0
    %p56 = por %p54, %p55
    %p57 = scmp.ne.s32.totalorder %s45, %s46
    %p58 = scmp.eq.s32.totalorder %s15, 1
    %p59 = por %p57, %p58
    %p61 = scmp.ne.s32.totalorder %s46, %s60
    %p62 = scmp.eq.s32.totalorder %s15, 0
    %p63 = por %p61, %p62
    %s65 = sadd.s32 %s64, 1
    %p68 = scmp.eq.s32.totalorder %s9, 1
    %p69 = scmp.ne.s32.totalorder %s64, %s66
    %p70 = scmp.eq.s32.totalorder %s9, 0
    %p71 = por %p69, %p70
    %p72 = scmp.ne.s32.totalorder %s64, %s66
    %p73 = scmp.eq.s32.totalorder %s14, 1
    %p74 = por %p72, %p73
    %p75 = scmp.ne.s32.totalorder %s66, %s67
    %p76 = scmp.eq.s32.totalorder %s14, 0
    %p77 = por %p75, %p76
    %p78 = scmp.ne.s32.totalorder %s66, %s67
    %p79 = scmp.eq.s32.totalorder %s15, 1
    %p80 = por %p78, %p79
    %p82 = scmp.ne.s32.totalorder %s67, %s81
    %p83 = scmp.eq.s32.totalorder %s15, 0
    %p84 = por %p82, %p83
    %s85 = ssub.s32 %s9, %s16
    %p86 = scmp.eq.s32.totalorder %s85, 0
    %s88 = sadd.s32 %s87, 1
    %s89 = scalar_select %p86, %s87, %s88
    %p92 = pneg %p86
    %p93 = scmp.eq.s32.totalorder %s9, 1
    %p94 = por %p92, %p93
    %p95 = scmp.ne.s32.totalorder %s87, %s90
    %p96 = scmp.eq.s32.totalorder %s9, 0
    %p97 = por %p95, %p96
    %p98 = scmp.ne.s32.totalorder %s87, %s90
    %p99 = scmp.eq.s32.totalorder %s14, 1
    %p100 = por %p98, %p99
    %p101 = scmp.ne.s32.totalorder %s90, %s91
    %p102 = scmp.eq.s32.totalorder %s14, 0
    %p103 = por %p101, %p102
    %p104 = scmp.ne.s32.totalorder %s90, %s91
    %p105 = scmp.eq.s32.totalorder %s15, 1
    %p106 = por %p104, %p105
    %p108 = scmp.ne.s32.totalorder %s91, %s107
    %p109 = scmp.eq.s32.totalorder %s15, 0
    %p110 = por %p108, %p109
    %p111 = scmp.le.s32.totalorder 1, %s9
    %p112 = scmp.lt.s32.totalorder %s9, 3
    %p113 = pnand %p111, %p112
    %p114 = pneg %p113
    // Predicated region
    $region9: #{gae_forward.5} parent=5 // pred_check
      _
    $region10: #{gae_forward.5} parent=5 // pred_check_branch
      %116 = sbr.rel (%p113) target = $region12
    $region11: #{gae_forward.5} parent=5 // pred_region
      %s117 = ssub.s32 %s9, 1
      // Predicated region
      $region13: #{gae_forward.5} parent=11 // pred_check
        %p118 = pneg %p56
      $region14: #{gae_forward.5} parent=11 // pred_check_branch
        %120 = sbr.rel (%p118) target = $region16
      $region15: #{gae_forward.5} parent=11 // pred_region
        _
      $region16: #{gae_forward.5} parent=11 // pred_fallthru
        _
      // Predicated region
      $region17: #{gae_forward.5} parent=11 // pred_check
        %p121 = pneg %p77
      $region18: #{gae_forward.5} parent=11 // pred_check_branch
        %123 = sbr.rel (%p121) target = $region20
      $region19: #{gae_forward.5} parent=11 // pred_region
        _
      $region20: #{gae_forward.5} parent=11 // pred_fallthru
        _
    $region12: #{gae_forward.5} parent=5 // pred_fallthru
      _
    %p124 = scmp.lt.s32.totalorder %s9, 2
    // Predicated region
    $region21: #{gae_forward.5} parent=5 // pred_check
      %p125 = pneg %p124
    $region22: #{gae_forward.5} parent=5 // pred_check_branch
      %127 = sbr.rel (%p125) target = $region24
    $region23: #{gae_forward.5} parent=5 // pred_region
      // Predicated region
      $region25: #{gae_forward.5} parent=23 // pred_check
        %p128 = pneg %p29
      $region26: #{gae_forward.5} parent=23 // pred_check_branch
        %130 = sbr.rel (%p128) target = $region28
      $region27: #{gae_forward.5} parent=23 // pred_region
        %p131 = scmp.lt.s32.totalorder %s9, 1
        %s132 = scalar_select %p131, %s9, 1
        %s133 = smul.addr %s132, 4
        %s134 = scalar_lea.vmem %s0, %s133
      $region28: #{gae_forward.5} parent=23 // pred_fallthru
        _
    $region24: #{gae_forward.5} parent=5 // pred_fallthru
      _
    %p135 = scmp.le.s32.totalorder 1, %s9
    %p136 = scmp.lt.s32.totalorder %s9, 3
    %p137 = pnand %p135, %p136
    %p138 = pneg %p137
    // Predicated region
    $region29: #{gae_forward.5} parent=5 // pred_check
      _
    $region30: #{gae_forward.5} parent=5 // pred_check_branch
      %140 = sbr.rel (%p137) target = $region32
    $region31: #{gae_forward.5} parent=5 // pred_region
      %s141 = ssub.s32 %s9, 1
      %p142 = scmp.lt.s32.totalorder %s14, 1
      %s143 = scalar_select %p142, %s14, 1
      %s144 = smul.addr %s143, 4
      %s145 = scalar_lea.vmem %s0, %s144
      %p146 = pneg %p35
      %p147 = pneg %p32
      %p148 = pneg %p56
      %p149 = pneg %p53
      %p150 = pneg %p77
      %p151 = pneg %p74
      %p152 = pneg %p103
      %p153 = pneg %p100
      %p154 = scmp.lt.s32.totalorder %s14, 1
      %s155 = scalar_select %p154, %s14, 1
      %s156 = smul.addr %s155, 8
      %s157 = scalar_lea.vmem %s3, %s156
      %p158 = scmp.lt.s32.totalorder %s14, 1
      %s159 = scalar_select %p158, %s14, 1
      %s160 = smul.addr %s159, 4
      %s161 = scalar_lea.vmem %s0, %s160
      %p162 = scmp.lt.s32.totalorder %s14, 1
      %s163 = scalar_select %p162, %s14, 1
      %s164 = smul.addr %s163, 8
      %s165 = scalar_lea.vmem %s3, %s164
      %v167 = vld [vmem:[%s161] sm:$0xf]
      %v168 = vld [vmem:[%s1] sm:$0xf]
      %v169 = vld [vmem:[%s1 + $0x4] sm:$0xf]
      %v170 = vld [vmem:[%s2] sm:$0x1]
      %v172 = vperm.slane %v170, 0
      %v176 = vunpack.c.l.b16 %v168
      %v177 = vunpack.c.l.b16 %v169
      %v178 = vpack.c.b16 %v177, %v176
      %vm179 = vcmask 121856
      %v181 = vsel %vm179, %v167, 0
      %vm183 = vcmask 1046528
      %vm184 = vcmask 1047552
      %v185 = vsel %vm183, 4294967295, 65535
      %v186 = vsel %vm184, %v185, 0
      %v188 = vand.u32 %v178, %v186
      %190 = vmatpush.bf16.msra.mxu0 0
      %191 = vmatpush.bf16.msra.mxu0 0
      %192 = vmatpush.bf16.msra.mxu0 0
      %193 = vmatpush.bf16.msra.mxu0 0
      %194 = vmatpush.bf16.msra.mxu0 0
      %195 = vmatpush.bf16.msra.mxu0 0
      %196 = vmatpush.bf16.msra.mxu0 0
      %197 = vmatpush.bf16.msra.mxu0 %v188
      %198 = vmatmul.bf16.gmra.mxu0 %v181
      %v199 = vpop.f32.mrf.mxu0
      %v200 = vadd.f32 %v172, %v199
      %v201 = vpop.f32.mrf.mxu0
      %202 = vdwg.mxu0
      %203 = vst [vmem:[%s165] sm:$0xff] %v200
      %p204 = scmp.lt.s32.totalorder %s14, 1
      %s205 = scalar_select %p204, %s14, 1
      %s206 = smul.addr %s205, 8
      %s207 = scalar_lea.vmem %s3, %s206
      // Predicated region
      $region33: #{gae_forward.5} parent=31 // pred_check
        %p208 = pneg %p100
      $region34: #{gae_forward.5} parent=31 // pred_check_branch
        %210 = sbr.rel (%p208) target = $region36
      $region35: #{gae_forward.5} parent=31 // pred_region
        _
      $region36: #{gae_forward.5} parent=31 // pred_fallthru
        _
    $region32: #{gae_forward.5} parent=5 // pred_fallthru
      _
    %p211 = scmp.le.s32.totalorder 2, %s9
    // Predicated region
    $region37: #{gae_forward.5} parent=5 // pred_check
      %p212 = pneg %p211
    $region38: #{gae_forward.5} parent=5 // pred_check_branch
      %214 = sbr.rel (%p212) target = $region40
    $region39: #{gae_forward.5} parent=5 // pred_region
      %s215 = ssub.s32 %s9, 2
      // Predicated region
      $region41: #{gae_forward.5} parent=39 // pred_check
        %p216 = pneg %p106
      $region42: #{gae_forward.5} parent=39 // pred_check_branch
        %218 = sbr.rel (%p216) target = $region44
      $region43: #{gae_forward.5} parent=39 // pred_region
        %p219 = scmp.lt.s32.totalorder %s15, 1
        %s220 = scalar_select %p219, %s15, 1
        %s221 = smul.addr %s220, 8
        %s222 = scalar_lea.vmem %s3, %s221
      $region44: #{gae_forward.5} parent=39 // pred_fallthru
        _
    $region40: #{gae_forward.5} parent=5 // pred_fallthru
      _
  $region6: #{gae_forward.5} parent=0 // loop_footer
    %s13 = sadd.s32 1, %s9
  $region7: #{gae_forward.5} parent=0 // loop_footer_branch
    %8 = sbr.rel target = $region3
  $region8: #{gae_forward.5} parent=0 // loop_exit
    _

// kernel: gae_forward.9
$region0: #{gae_forward.9}
  #allocation0 [shape = 'u32[]', space=smem, size = 0x4, offset = 0x4, fixed_abs, tag = 'smem constant byte address 0x4 - core index']
  #allocation1 [shape = 'u32[72,128]{1,0:T(1,128)}', space=vmem, size = 0x9000, scoped, tag = 'internal scratch']
  #allocation2 [shape = 'f32[1,1]{1,0:T(1,128)S(1)}', space=vmem, size = 0x200, scoped, tag = 'scoped memory for gae_forward.9']
  %s0 = inlined_call_operand.vmem [shape: f32[2,16], index: 0, kind: input, shape index: {}]
  %s1 = inlined_call_operand.vmem [shape: f32[16,128], index: 1, kind: input, shape index: {}]
  %s2 = inlined_call_operand.vmem [shape: f32[128,1], index: 2, kind: input, shape index: {}]
  %s3 = inlined_call_operand.<no memory space> [shape: f32[1,1], index: 3, kind: input, shape index: {}]
  %s4 = inlined_call_operand.vmem [shape: f32[2,1], index: 4, kind: output, shape index: {}]
  %s5 = sld [smem:[#allocation0]]
  $region26: #{gae_forward.9} parent=0
    _
  %s7 = ssub.s32 1, %s5
  %s8 = scalar_select 0, %s7, %s5
  %v9 = vstv %s3
  %10 = vst [vmem:[#allocation2] sm:$0x1] %v9
  // Predicated region
  $region2: #{gae_forward.9} parent=0 // pred_check
    _
  $region3: #{gae_forward.9} parent=0 // pred_check_branch
    %12 = sbr.rel (0) target = $region5
  $region4: #{gae_forward.9} parent=0 // pred_region
    _
  $region5: #{gae_forward.9} parent=0 // pred_fallthru
    _
  // Predicated region
  $region6: #{gae_forward.9} parent=0 // pred_check
    _
  $region7: #{gae_forward.9} parent=0 // pred_check_branch
    %14 = sbr.rel (0) target = $region9
  $region8: #{gae_forward.9} parent=0 // pred_region
    _
  $region9: #{gae_forward.9} parent=0 // pred_fallthru
    _
  // Predicated region
  $region10: #{gae_forward.9} parent=0 // pred_check
    _
  $region11: #{gae_forward.9} parent=0 // pred_check_branch
    %16 = sbr.rel (0) target = $region13
  $region12: #{gae_forward.9} parent=0 // pred_region
    _
  $region13: #{gae_forward.9} parent=0 // pred_fallthru
    _
  // Predicated region
  $region14: #{gae_forward.9} parent=0 // pred_check
    _
  $region15: #{gae_forward.9} parent=0 // pred_check_branch
    %18 = sbr.rel (0) target = $region17
  $region16: #{gae_forward.9} parent=0 // pred_region
    _
  $region17: #{gae_forward.9} parent=0 // pred_fallthru
    _
  %v19 = vld [vmem:[%s0] sm:$0x3]
  %v20 = vld [vmem:[%s1] sm:$0xff]
  %v21 = vld [vmem:[%s1 + $0x8] sm:$0xff]
  %vm22 = vcmask 130048
  %v24 = vsel %vm22, %v19, 0
  %26 = vmatpush.msra.mxu0 0.0
  %27 = vmatpush.msra.mxu0 0.0
  %28 = vmatpush.msra.mxu0 0.0
  %29 = vmatpush.msra.mxu0 0.0
  %30 = vmatpush.msra.mxu0 0.0
  %31 = vmatpush.msra.mxu0 0.0
  %32 = vmatpush.msra.mxu0 0.0
  %33 = vmatpush.msra.mxu0 0.0
  %34 = vmatpush.msra.mxu0 0.0
  %35 = vmatpush.msra.mxu0 0.0
  %36 = vmatpush.msra.mxu0 0.0
  %37 = vmatpush.msra.mxu0 0.0
  %38 = vmatpush.msra.mxu0 0.0
  %39 = vmatpush.msra.mxu0 0.0
  %40 = vmatpush.msra.mxu0 %v21
  %41 = vmatpush.msra.mxu0 %v20
  %42 = vmatmul.f32.gmra.mxu0 %v24
  %v43 = vpop.f32.mrf.mxu0
  %v44 = vadd.f32 0.0, %v43
  %45 = vdwg.mxu0
  %v46 = vld [vmem:[%s2] sm:$0xff]
  %v47 = vld [vmem:[%s2 + $0x8] sm:$0xff]
  %v48 = vld [vmem:[%s2 + $0x10] sm:$0xff]
  %v49 = vld [vmem:[%s2 + $0x18] sm:$0xff]
  %v50 = vld [vmem:[%s2 + $0x20] sm:$0xff]
  %v51 = vld [vmem:[%s2 + $0x28] sm:$0xff]
  %v52 = vld [vmem:[%s2 + $0x30] sm:$0xff]
  %v53 = vld [vmem:[%s2 + $0x38] sm:$0xff]
  %v54 = vld [vmem:[%s2 + $0x40] sm:$0xff]
  %v55 = vld [vmem:[%s2 + $0x48] sm:$0xff]
  %v56 = vld [vmem:[%s2 + $0x50] sm:$0xff]
  %v57 = vld [vmem:[%s2 + $0x58] sm:$0xff]
  %v58 = vld [vmem:[%s2 + $0x60] sm:$0xff]
  %v59 = vld [vmem:[%s2 + $0x68] sm:$0xff]
  %v60 = vld [vmem:[%s2 + $0x70] sm:$0xff]
  %v61 = vld [vmem:[%s2 + $0x78] sm:$0xff]
  %v62 = vld [vmem:[#allocation2] sm:$0x1]
  %v64 = vperm.slane %v62, 0
  %66 = vmatpush.msra.mxu0 %v61
  %67 = vmatpush.msra.mxu0 %v60
  %68 = vmatpush.msra.mxu0 %v59
  %69 = vmatpush.msra.mxu0 %v58
  %70 = vmatpush.msra.mxu0 %v57
  %71 = vmatpush.msra.mxu0 %v56
  %72 = vmatpush.msra.mxu0 %v55
  %73 = vmatpush.msra.mxu0 %v54
  %74 = vmatpush.msra.mxu0 %v53
  %75 = vmatpush.msra.mxu0 %v52
  %76 = vmatpush.msra.mxu0 %v51
  %77 = vmatpush.msra.mxu0 %v50
  %78 = vmatpush.msra.mxu0 %v49
  %79 = vmatpush.msra.mxu0 %v48
  %80 = vmatpush.msra.mxu0 %v47
  %81 = vmatpush.msra.mxu0 %v46
  %82 = vmatmul.f32.gmra.mxu0 %v44
  %v83 = vpop.f32.mrf.mxu0
  %v84 = vadd.f32 %v64, %v83
  %85 = vdwg.mxu0
  %vm86 = vcmask 1024
  %87 = vst.msk [vmem:[%s4] sm:$0x3] %vm86, %v84
  // Predicated region
  $region18: #{gae_forward.9} parent=0 // pred_check
    _
  $region19: #{gae_forward.9} parent=0 // pred_check_branch
    %89 = sbr.rel (0) target = $region21
  $region20: #{gae_forward.9} parent=0 // pred_region
    _
  $region21: #{gae_forward.9} parent=0 // pred_fallthru
    _
  // Predicated region
  $region22: #{gae_forward.9} parent=0 // pred_check
    _
  $region23: #{gae_forward.9} parent=0 // pred_check_branch
    %91 = sbr.rel (0) target = $region25
  $region24: #{gae_forward.9} parent=0 // pred_region
    _
  $region25: #{gae_forward.9} parent=0 // pred_fallthru
    _

// kernel: gae_forward.6
$region0: #{gae_forward.6}
  #allocation0 [shape = 'u32[]', space=smem, size = 0x4, offset = 0x4, fixed_abs, tag = 'smem constant byte address 0x4 - core index']
  #allocation1 [shape = 'u32[72,128]{1,0:T(1,128)}', space=vmem, size = 0x9000, scoped, tag = 'internal scratch']
  #allocation2 [shape = 'f32[8,128]{1,0:T(8,128)}', space=vmem, size = 0x1000, scoped, tag = 'scratch operand']
  #allocation3 [shape = 'f32[8,128]{1,0:T(8,128)}', space=vmem, size = 0x1000, scoped, tag = 'scratch operand']
  #allocation4 [shape = 'f32[8,128]{1,0:T(8,128)}', space=vmem, size = 0x1000, scoped, tag = 'scratch operand']
  #allocation5 [shape = 'f32[8,128]{1,0:T(8,128)}', space=vmem, size = 0x1000, scoped, tag = 'scratch operand']
  %s0 = inlined_call_operand.vmem [shape: f32[16,128], index: 0, kind: input, shape index: {}, may-alias: {0,1}]
  %s1 = inlined_call_operand.vmem [shape: f32[16,128], index: 1, kind: input, shape index: {}, may-alias: {0,1}]
  %s2 = inlined_call_operand.vmem [shape: f32[16,1], index: 2, kind: input, shape index: {}]
  %s3 = inlined_call_operand.vmem [shape: bf16[16,16,5], index: 3, kind: input, shape index: {}]
  %s4 = inlined_call_operand.vmem [shape: bf16[5,128], index: 4, kind: input, shape index: {}]
  %s5 = inlined_call_operand.vmem [shape: f32[1,128], index: 5, kind: input, shape index: {}]
  %s6 = inlined_call_operand.vmem [shape: bf16[512,128], index: 6, kind: input, shape index: {}]
  %s7 = inlined_call_operand.vmem [shape: f32[1,128], index: 7, kind: input, shape index: {}]
  %s8 = inlined_call_operand.vmem [shape: f32[1,128], index: 8, kind: input, shape index: {}]
  %s9 = inlined_call_operand.vmem [shape: f32[1,128], index: 9, kind: input, shape index: {}]
  %s10 = inlined_call_operand.vmem [shape: f32[16,128], index: 10, kind: output, shape index: {}]
  %s11 = sld [smem:[#allocation0]]
  $region122: #{gae_forward.6} parent=0
    _
  %s13 = ssub.s32 1, %s11
  %s14 = scalar_select 0, %s13, %s11
  $region1: #{gae_forward.6} parent=0
    #allocation6 [shape = 'u8[32768]{0}', space=vmem, size = 0x8000, scoped, tag = 'input window, operand 3']
    loop: start=0, step=1, limit=6
    $region2: #{gae_forward.6} parent=1 // loop_pre_header
      _
    $region3: #{gae_forward.6} parent=1 // loop_header
      %s16 = sphi 0, %s20
      %p17 = scmp.ge.s32.totalorder %s16, 6
      %s23 = sphi 0, %s35
      %s24 = sphi 0, %s31
      %s25 = sphi 0, %s23
      %s26 = sphi 0, %s24
      %s27 = sphi 0, %s25
      %s28 = sphi 0, %s26
      %s38 = sphi 0, %s40
      %s41 = sphi 0, %s38
      %s42 = sphi 0, %s41
      %s58 = sphi 0, %s42
      %s64 = sphi 0, %s66
      %s67 = sphi 0, %s64
      %s68 = sphi 0, %s67
      %s84 = sphi 0, %s68
      %s90 = sphi 0, %s92
      %s93 = sphi 0, %s90
      %s94 = sphi 0, %s93
      %s110 = sphi 0, %s94
      %s118 = sphi 0, %s120
      %s121 = sphi 0, %s118
      %s122 = sphi 0, %s121
      %s138 = sphi 0, %s122
      %s142 = sphi 0, %s142
      %s144 = sphi 0, %s142
      %s145 = sphi 0, %s144
      %s159 = sphi 0, %s145
      %s163 = sphi 0, %s163
      %s165 = sphi 0, %s163
      %s166 = sphi 0, %s165
      %s180 = sphi 0, %s166
      %s184 = sphi 0, %s184
      %s186 = sphi 0, %s184
      %s187 = sphi 0, %s186
      %s201 = sphi 0, %s187
      %s205 = sphi 0, %s205
      %s207 = sphi 0, %s205
      %s208 = sphi 0, %s207
      %s222 = sphi 0, %s208
      %s226 = sphi 0, %s226
      %s228 = sphi 0, %s226
      %s229 = sphi 0, %s228
      %s243 = sphi 0, %s229
      %s247 = sphi 0, %s247
      %s249 = sphi 0, %s247
      %s250 = sphi 0, %s249
      %s264 = sphi 0, %s250
      %s270 = sphi 0, %s272
      %s273 = sphi 0, %s270
      %s274 = sphi 0, %s273
      %s290 = sphi 0, %s274
    $region4: #{gae_forward.6} parent=1 // loop_header_branch
      %19 = sbr.rel (%p17) target = $region8
    $region5: #{gae_forward.6} parent=1 // loop_body
      %s21 = ssub.s32 %s16, 1
      %s22 = ssub.s32 %s16, 2
      %s29 = sadd.s32 1, %s24
      %p30 = scmp.ge.s32.totalorder %s29, 2
      %s31 = scalar_select %p30, 0, %s29
      %s32 = sadd.s32 1, %s23
      %s33 = scalar_select %p30, %s32, %s23
      %p34 = scmp.ge.s32.totalorder %s33, 2
      %s35 = scalar_select %p34, 0, %s33
      %s36 = ssub.s32 %s24, %s31
      %p37 = scmp.eq.s32.totalorder %s36, 0
      %s39 = sadd.s32 %s38, 1
      %s40 = scalar_select %p37, %s38, %s39
      %p43 = pneg %p37
      %p44 = scmp.eq.s32.totalorder %s16, 3
      %p45 = por %p43, %p44
      %p46 = scmp.ne.s32.totalorder %s38, %s41
      %p47 = scmp.eq.s32.totalorder %s16, 0
      %p48 = por %p46, %p47
      %p49 = scmp.ne.s32.totalorder %s38, %s41
      %p50 = scmp.eq.s32.totalorder %s21, 3
      %p51 = por %p49, %p50
      %p52 = scmp.ne.s32.totalorder %s41, %s42
      %p53 = scmp.eq.s32.totalorder %s21, 0
      %p54 = por %p52, %p53
      %p55 = scmp.ne.s32.totalorder %s41, %s42
      %p56 = scmp.eq.s32.totalorder %s22, 3
      %p57 = por %p55, %p56
      %p59 = scmp.ne.s32.totalorder %s42, %s58
      %p60 = scmp.eq.s32.totalorder %s22, 0
      %p61 = por %p59, %p60
      %s62 = ssub.s32 %s23, %s35
      %p63 = scmp.eq.s32.totalorder %s62, 0
      %s65 = sadd.s32 %s64, 1
      %s66 = scalar_select %p63, %s64, %s65
      %p69 = pneg %p63
      %p70 = scmp.eq.s32.totalorder %s16, 3
      %p71 = por %p69, %p70
      %p72 = scmp.ne.s32.totalorder %s64, %s67
      %p73 = scmp.eq.s32.totalorder %s16, 0
      %p74 = por %p72, %p73
      %p75 = scmp.ne.s32.totalorder %s64, %s67
      %p76 = scmp.eq.s32.totalorder %s21, 3
      %p77 = por %p75, %p76
      %p78 = scmp.ne.s32.totalorder %s67, %s68
      %p79 = scmp.eq.s32.totalorder %s21, 0
      %p80 = por %p78, %p79
      %p81 = scmp.ne.s32.totalorder %s67, %s68
      %p82 = scmp.eq.s32.totalorder %s22, 3
      %p83 = por %p81, %p82
      %p85 = scmp.ne.s32.totalorder %s68, %s84
      %p86 = scmp.eq.s32.totalorder %s22, 0
      %p87 = por %p85, %p86
      %s88 = ssub.s32 %s23, %s35
      %p89 = scmp.eq.s32.totalorder %s88, 0
      %s91 = sadd.s32 %s90, 1
      %s92 = scalar_select %p89, %s90, %s91
      %p95 = pneg %p89
      %p96 = scmp.eq.s32.totalorder %s16, 3
      %p97 = por %p95, %p96
      %p98 = scmp.ne.s32.totalorder %s90, %s93
      %p99 = scmp.eq.s32.totalorder %s16, 0
      %p100 = por %p98, %p99
      %p101 = scmp.ne.s32.totalorder %s90, %s93
      %p102 = scmp.eq.s32.totalorder %s21, 3
      %p103 = por %p101, %p102
      %p104 = scmp.ne.s32.totalorder %s93, %s94
      %p105 = scmp.eq.s32.totalorder %s21, 0
      %p106 = por %p104, %p105
      %p107 = scmp.ne.s32.totalorder %s93, %s94
      %p108 = scmp.eq.s32.totalorder %s22, 3
      %p109 = por %p107, %p108
      %p111 = scmp.ne.s32.totalorder %s94, %s110
      %p112 = scmp.eq.s32.totalorder %s22, 0
      %p113 = por %p111, %p112
      %s114 = ssub.s32 %s23, %s35
      %s115 = ssub.s32 %s24, %s31
      %s116 = sor.u32 %s114, %s115
      %p117 = scmp.eq.s32.totalorder %s116, 0
      %s119 = sadd.s32 %s118, 1
      %s120 = scalar_select %p117, %s118, %s119
      %p123 = pneg %p117
      %p124 = scmp.eq.s32.totalorder %s16, 3
      %p125 = por %p123, %p124
      %p126 = scmp.ne.s32.totalorder %s118, %s121
      %p127 = scmp.eq.s32.totalorder %s16, 0
      %p128 = por %p126, %p127
      %p129 = scmp.ne.s32.totalorder %s118, %s121
      %p130 = scmp.eq.s32.totalorder %s21, 3
      %p131 = por %p129, %p130
      %p132 = scmp.ne.s32.totalorder %s121, %s122
      %p133 = scmp.eq.s32.totalorder %s21, 0
      %p134 = por %p132, %p133
      %p135 = scmp.ne.s32.totalorder %s121, %s122
      %p136 = scmp.eq.s32.totalorder %s22, 3
      %p137 = por %p135, %p136
      %p139 = scmp.ne.s32.totalorder %s122, %s138
      %p140 = scmp.eq.s32.totalorder %s22, 0
      %p141 = por %p139, %p140
      %s143 = sadd.s32 %s142, 1
      %p146 = scmp.eq.s32.totalorder %s16, 3
      %p147 = scmp.ne.s32.totalorder %s142, %s144
      %p148 = scmp.eq.s32.totalorder %s16, 0
      %p149 = por %p147, %p148
      %p150 = scmp.ne.s32.totalorder %s142, %s144
      %p151 = scmp.eq.s32.totalorder %s21, 3
      %p152 = por %p150, %p151
      %p153 = scmp.ne.s32.totalorder %s144, %s145
      %p154 = scmp.eq.s32.totalorder %s21, 0
      %p155 = por %p153, %p154
      %p156 = scmp.ne.s32.totalorder %s144, %s145
      %p157 = scmp.eq.s32.totalorder %s22, 3
      %p158 = por %p156, %p157
      %p160 = scmp.ne.s32.totalorder %s145, %s159
      %p161 = scmp.eq.s32.totalorder %s22, 0
      %p162 = por %p160, %p161
      %s164 = sadd.s32 %s163, 1
      %p167 = scmp.eq.s32.totalorder %s16, 3
      %p168 = scmp.ne.s32.totalorder %s163, %s165
      %p169 = scmp.eq.s32.totalorder %s16, 0
      %p170 = por %p168, %p169
      %p171 = scmp.ne.s32.totalorder %s163, %s165
      %p172 = scmp.eq.s32.totalorder %s21, 3
      %p173 = por %p171, %p172
      %p174 = scmp.ne.s32.totalorder %s165, %s166
      %p175 = scmp.eq.s32.totalorder %s21, 0
      %p176 = por %p174, %p175
      %p177 = scmp.ne.s32.totalorder %s165, %s166
      %p178 = scmp.eq.s32.totalorder %s22, 3
      %p179 = por %p177, %p178
      %p181 = scmp.ne.s32.totalorder %s166, %s180
      %p182 = scmp.eq.s32.totalorder %s22, 0
      %p183 = por %p181, %p182
      %s185 = sadd.s32 %s184, 1
      %p188 = scmp.eq.s32.totalorder %s16, 3
      %p189 = scmp.ne.s32.totalorder %s184, %s186
      %p190 = scmp.eq.s32.totalorder %s16, 0
      %p191 = por %p189, %p190
      %p192 = scmp.ne.s32.totalorder %s184, %s186
      %p193 = scmp.eq.s32.totalorder %s21, 3
      %p194 = por %p192, %p193
      %p195 = scmp.ne.s32.totalorder %s186, %s187
      %p196 = scmp.eq.s32.totalorder %s21, 0
      %p197 = por %p195, %p196
      %p198 = scmp.ne.s32.totalorder %s186, %s187
      %p199 = scmp.eq.s32.totalorder %s22, 3
      %p200 = por %p198, %p199
      %p202 = scmp.ne.s32.totalorder %s187, %s201
      %p203 = scmp.eq.s32.totalorder %s22, 0
      %p204 = por %p202, %p203
      %s206 = sadd.s32 %s205, 1
      %p209 = scmp.eq.s32.totalorder %s16, 3
      %p210 = scmp.ne.s32.totalorder %s205, %s207
      %p211 = scmp.eq.s32.totalorder %s16, 0
      %p212 = por %p210, %p211
      %p213 = scmp.ne.s32.totalorder %s205, %s207
      %p214 = scmp.eq.s32.totalorder %s21, 3
      %p215 = por %p213, %p214
      %p216 = scmp.ne.s32.totalorder %s207, %s208
      %p217 = scmp.eq.s32.totalorder %s21, 0
      %p218 = por %p216, %p217
      %p219 = scmp.ne.s32.totalorder %s207, %s208
      %p220 = scmp.eq.s32.totalorder %s22, 3
      %p221 = por %p219, %p220
      %p223 = scmp.ne.s32.totalorder %s208, %s222
      %p224 = scmp.eq.s32.totalorder %s22, 0
      %p225 = por %p223, %p224
      %s227 = sadd.s32 %s226, 1
      %p230 = scmp.eq.s32.totalorder %s16, 3
      %p231 = scmp.ne.s32.totalorder %s226, %s228
      %p232 = scmp.eq.s32.totalorder %s16, 0
      %p233 = por %p231, %p232
      %p234 = scmp.ne.s32.totalorder %s226, %s228
      %p235 = scmp.eq.s32.totalorder %s21, 3
      %p236 = por %p234, %p235
      %p237 = scmp.ne.s32.totalorder %s228, %s229
      %p238 = scmp.eq.s32.totalorder %s21, 0
      %p239 = por %p237, %p238
      %p240 = scmp.ne.s32.totalorder %s228, %s229
      %p241 = scmp.eq.s32.totalorder %s22, 3
      %p242 = por %p240, %p241
      %p244 = scmp.ne.s32.totalorder %s229, %s243
      %p245 = scmp.eq.s32.totalorder %s22, 0
      %p246 = por %p244, %p245
      %s248 = sadd.s32 %s247, 1
      %p251 = scmp.eq.s32.totalorder %s16, 3
      %p252 = scmp.ne.s32.totalorder %s247, %s249
      %p253 = scmp.eq.s32.totalorder %s16, 0
      %p254 = por %p252, %p253
      %p255 = scmp.ne.s32.totalorder %s247, %s249
      %p256 = scmp.eq.s32.totalorder %s21, 3
      %p257 = por %p255, %p256
      %p258 = scmp.ne.s32.totalorder %s249, %s250
      %p259 = scmp.eq.s32.totalorder %s21, 0
      %p260 = por %p258, %p259
      %p261 = scmp.ne.s32.totalorder %s249, %s250
      %p262 = scmp.eq.s32.totalorder %s22, 3
      %p263 = por %p261, %p262
      %p265 = scmp.ne.s32.totalorder %s250, %s264
      %p266 = scmp.eq.s32.totalorder %s22, 0
      %p267 = por %p265, %p266
      %s268 = ssub.s32 %s23, %s35
      %p269 = scmp.eq.s32.totalorder %s268, 0
      %s271 = sadd.s32 %s270, 1
      %s272 = scalar_select %p269, %s270, %s271
      %p275 = pneg %p269
      %p276 = scmp.eq.s32.totalorder %s16, 3
      %p277 = por %p275, %p276
      %p278 = scmp.ne.s32.totalorder %s270, %s273
      %p279 = scmp.eq.s32.totalorder %s16, 0
      %p280 = por %p278, %p279
      %p281 = scmp.ne.s32.totalorder %s270, %s273
      %p282 = scmp.eq.s32.totalorder %s21, 3
      %p283 = por %p281, %p282
      %p284 = scmp.ne.s32.totalorder %s273, %s274
      %p285 = scmp.eq.s32.totalorder %s21, 0
      %p286 = por %p284, %p285
      %p287 = scmp.ne.s32.totalorder %s273, %s274
      %p288 = scmp.eq.s32.totalorder %s22, 3
      %p289 = por %p287, %p288
      %p291 = scmp.ne.s32.totalorder %s274, %s290
      %p292 = scmp.eq.s32.totalorder %s22, 0
      %p293 = por %p291, %p292
      %p294 = scmp.le.s32.totalorder 1, %s16
      %p295 = scmp.lt.s32.totalorder %s16, 5
      %p296 = pnand %p294, %p295
      %p297 = pneg %p296
      // Predicated region
      $region9: #{gae_forward.6} parent=5 // pred_check
        _
      $region10: #{gae_forward.6} parent=5 // pred_check_branch
        %299 = sbr.rel (%p296) target = $region12
      $region11: #{gae_forward.6} parent=5 // pred_region
        %s300 = ssub.s32 %s16, 1
        // Predicated region
        $region13: #{gae_forward.6} parent=11 // pred_check
          %p301 = pneg %p155
        $region14: #{gae_forward.6} parent=11 // pred_check_branch
          %303 = sbr.rel (%p301) target = $region16
        $region15: #{gae_forward.6} parent=11 // pred_region
          _
        $region16: #{gae_forward.6} parent=11 // pred_fallthru
          _
        // Predicated region
        $region17: #{gae_forward.6} parent=11 // pred_check
          %p304 = pneg %p176
        $region18: #{gae_forward.6} parent=11 // pred_check_branch
          %306 = sbr.rel (%p304) target = $region20
        $region19: #{gae_forward.6} parent=11 // pred_region
          _
        $region20: #{gae_forward.6} parent=11 // pred_fallthru
          _
        // Predicated region
        $region21: #{gae_forward.6} parent=11 // pred_check
          %p307 = pneg %p197
        $region22: #{gae_forward.6} parent=11 // pred_check_branch
          %309 = sbr.rel (%p307) target = $region24
        $region23: #{gae_forward.6} parent=11 // pred_region
          _
        $region24: #{gae_forward.6} parent=11 // pred_fallthru
          _
        // Predicated region
        $region25: #{gae_forward.6} parent=11 // pred_check
          %p310 = pneg %p218
        $region26: #{gae_forward.6} parent=11 // pred_check_branch
          %312 = sbr.rel (%p310) target = $region28
        $region27: #{gae_forward.6} parent=11 // pred_region
          _
        $region28: #{gae_forward.6} parent=11 // pred_fallthru
          _
        // Predicated region
        $region29: #{gae_forward.6} parent=11 // pred_check
          %p313 = pneg %p239
        $region30: #{gae_forward.6} parent=11 // pred_check_branch
          %315 = sbr.rel (%p313) target = $region32
        $region31: #{gae_forward.6} parent=11 // pred_region
          _
        $region32: #{gae_forward.6} parent=11 // pred_fallthru
          _
        // Predicated region
        $region33: #{gae_forward.6} parent=11 // pred_check
          %p316 = pneg %p260
        $region34: #{gae_forward.6} parent=11 // pred_check_branch
          %318 = sbr.rel (%p316) target = $region36
        $region35: #{gae_forward.6} parent=11 // pred_region
          _
        $region36: #{gae_forward.6} parent=11 // pred_fallthru
          _
      $region12: #{gae_forward.6} parent=5 // pred_fallthru
        _
      %p319 = scmp.lt.s32.totalorder %s16, 4
      // Predicated region
      $region37: #{gae_forward.6} parent=5 // pred_check
        %p320 = pneg %p319
      $region38: #{gae_forward.6} parent=5 // pred_check_branch
        %322 = sbr.rel (%p320) target = $region40
      $region39: #{gae_forward.6} parent=5 // pred_region
        // Predicated region
        $region41: #{gae_forward.6} parent=39 // pred_check
          %p323 = pneg %p48
        $region42: #{gae_forward.6} parent=39 // pred_check_branch
          %325 = sbr.rel (%p323) target = $region44
        $region43: #{gae_forward.6} parent=39 // pred_region
          %p326 = scmp.lt.s32.totalorder %s24, 1
          %s327 = scalar_select %p326, %s24, 1
          %s328 = smul.addr %s327, 8
          %s329 = scalar_lea.vmem %s0, %s328
        $region44: #{gae_forward.6} parent=39 // pred_fallthru
          _
        // Predicated region
        $region45: #{gae_forward.6} parent=39 // pred_check
          %p330 = pneg %p74
        $region46: #{gae_forward.6} parent=39 // pred_check_branch
          %332 = sbr.rel (%p330) target = $region48
        $region47: #{gae_forward.6} parent=39 // pred_region
          %p333 = scmp.lt.s32.totalorder %s23, 1
          %s334 = scalar_select %p333, %s23, 1
          %s335 = smul.addr %s334, 8
          %s336 = scalar_lea.vmem %s1, %s335
        $region48: #{gae_forward.6} parent=39 // pred_fallthru
          _
        // Predicated region
        $region49: #{gae_forward.6} parent=39 // pred_check
          %p337 = pneg %p100
        $region50: #{gae_forward.6} parent=39 // pred_check_branch
          %339 = sbr.rel (%p337) target = $region52
        $region51: #{gae_forward.6} parent=39 // pred_region
          %p340 = scmp.lt.s32.totalorder %s23, 1
          %s341 = scalar_select %p340, %s23, 1
          %s342 = smul.addr %s341, 8
          %s343 = scalar_lea.vmem %s2, %s342
        $region52: #{gae_forward.6} parent=39 // pred_fallthru
          _
        // Predicated region
        $region53: #{gae_forward.6} parent=39 // pred_check
          %p344 = pneg %p128
        $region54: #{gae_forward.6} parent=39 // pred_check_branch
          %346 = sbr.rel (%p344) target = $region56
        $region55: #{gae_forward.6} parent=39 // pred_region
          %s347 = sand.u32 %s118, 1
          %s348 = sand.u32 %s118, 1
          %s349 = smul.addr %s348, 32
          %s350 = scalar_lea.vmem [#allocation6], %s349
          %s351 = smul.u32 8, %s23
          %s352 = smul.addr %s351, 2
          %s353 = sadd.s32 %s24, %s352
          %s354 = smul.addr %s353, 4
          %s355 = scalar_lea.vmem %s3, %s354
          // Predicated region
          $region57: #{gae_forward.6} parent=55 // pred_check
            _
          $region58: #{gae_forward.6} parent=55 // pred_check_branch
            %357 = sbr.rel (0) target = $region60
          $region59: #{gae_forward.6} parent=55 // pred_region
            // Predicated region
            $region61: #{gae_forward.6} parent=59 // pred_check
              _
            $region62: #{gae_forward.6} parent=59 // pred_check_branch
              %359 = sbr.rel target = $region64
            $region63: #{gae_forward.6} parent=59 // pred_region
              // Predicated region
              $region76: #{gae_forward.6} parent=63 // pred_check
                _
              $region77: #{gae_forward.6} parent=63 // pred_check_branch
                %389 = sbr.rel (0) target = $region79
              $region78: #{gae_forward.6} parent=63 // pred_region
                loop: start=0, step=1, limit=1
                $region80: #{gae_forward.6} parent=78 // loop_pre_header
                  _
                $region81: #{gae_forward.6} parent=78 // loop_header
                  %s391 = sphi 0, %s395
                  %p392 = scmp.ge.s32.totalorder %s391, 1
                  %s396 = sphi %s355, %s355
                  %s397 = sphi %s350, %s350
                $region82: #{gae_forward.6} parent=78 // loop_header_branch
                  %394 = sbr.rel (%p392) target = $region86
                $region83: #{gae_forward.6} parent=78 // loop_body
                  _
                $region84: #{gae_forward.6} parent=78 // loop_footer
                  %s395 = sadd.s32 1, %s391
                $region85: #{gae_forward.6} parent=78 // loop_footer_branch
                  %390 = sbr.rel target = $region81
                $region86: #{gae_forward.6} parent=78 // loop_exit
                  _
                %s399 = ssub.s32 16, 1
                loop: start=0, step=1, limit=1
                $region87: #{gae_forward.6} parent=78 // loop_pre_header
                  _
                $region88: #{gae_forward.6} parent=78 // loop_header
                  %s401 = sphi 0, %s405
                  %p402 = scmp.ge.s32.totalorder %s401, 1
                  %s406 = sphi %s355, %s355
                  %s407 = sphi %s350, %s350
                $region89: #{gae_forward.6} parent=78 // loop_header_branch
                  %404 = sbr.rel (%p402) target = $region93
                $region90: #{gae_forward.6} parent=78 // loop_body
                  %v408 = vld [vmem:[%s406] sm:%s399]
                  %409 = vst [vmem:[%s407] sm:%s399] %v408
                  %v410 = vld [vmem:[%s406 + $0x8] sm:%s399]
                  %411 = vst [vmem:[%s407 + $0x4] sm:%s399] %v410
                  %v412 = vld [vmem:[%s406 + $0x10] sm:%s399]
                  %413 = vst [vmem:[%s407 + $0x8] sm:%s399] %v412
                  %v414 = vld [vmem:[%s406 + $0x18] sm:%s399]
                  %415 = vst [vmem:[%s407 + $0xc] sm:%s399] %v414
                  %v416 = vld [vmem:[%s406 + $0x20] sm:%s399]
                  %417 = vst [vmem:[%s407 + $0x10] sm:%s399] %v416
                  %v418 = vld [vmem:[%s406 + $0x28] sm:%s399]
                  %419 = vst [vmem:[%s407 + $0x14] sm:%s399] %v418
                  %v420 = vld [vmem:[%s406 + $0x30] sm:%s399]
                  %421 = vst [vmem:[%s407 + $0x18] sm:%s399] %v420
                  %v422 = vld [vmem:[%s406 + $0x38] sm:%s399]
                  %423 = vst [vmem:[%s407 + $0x1c] sm:%s399] %v422
                $region91: #{gae_forward.6} parent=78 // loop_footer
                  %s405 = sadd.s32 1, %s401
                $region92: #{gae_forward.6} parent=78 // loop_footer_branch
                  %400 = sbr.rel target = $region88
                $region93: #{gae_forward.6} parent=78 // loop_exit
                  _
              $region79: #{gae_forward.6} parent=63 // pred_fallthru
                _
            $region64: #{gae_forward.6} parent=59 // pred_fallthru
              _
            // Predicated region
            $region65: #{gae_forward.6} parent=59 // pred_check
              _
            $region66: #{gae_forward.6} parent=59 // pred_check_branch
              %361 = sbr.rel (0) target = $region68
            $region67: #{gae_forward.6} parent=59 // pred_region
              %s363 = ssub.s32 16, 1
              loop: start=0, step=1, limit=1
              $region69: #{gae_forward.6} parent=67 // loop_pre_header
                _
              $region70: #{gae_forward.6} parent=67 // loop_header
                %s365 = sphi 0, %s369
                %p366 = scmp.ge.s32.totalorder %s365, 1
                %s370 = sphi %s355, %s355
                %s371 = sphi %s350, %s350
              $region71: #{gae_forward.6} parent=67 // loop_header_branch
                %368 = sbr.rel (%p366) target = $region75
              $region72: #{gae_forward.6} parent=67 // loop_body
                %v372 = vld [vmem:[%s370] sm:%s363]
                %373 = vst [vmem:[%s371] sm:%s363] %v372
                %v374 = vld [vmem:[%s370 + $0x8] sm:%s363]
                %375 = vst [vmem:[%s371 + $0x4] sm:%s363] %v374
                %v376 = vld [vmem:[%s370 + $0x10] sm:%s363]
                %377 = vst [vmem:[%s371 + $0x8] sm:%s363] %v376
                %v378 = vld [vmem:[%s370 + $0x18] sm:%s363]
                %379 = vst [vmem:[%s371 + $0xc] sm:%s363] %v378
                %v380 = vld [vmem:[%s370 + $0x20] sm:%s363]
                %381 = vst [vmem:[%s371 + $0x10] sm:%s363] %v380
                %v382 = vld [vmem:[%s370 + $0x28] sm:%s363]
                %383 = vst [vmem:[%s371 + $0x14] sm:%s363] %v382
                %v384 = vld [vmem:[%s370 + $0x30] sm:%s363]
                %385 = vst [vmem:[%s371 + $0x18] sm:%s363] %v384
                %v386 = vld [vmem:[%s370 + $0x38] sm:%s363]
                %387 = vst [vmem:[%s371 + $0x1c] sm:%s363] %v386
              $region73: #{gae_forward.6} parent=67 // loop_footer
                %s369 = sadd.s32 1, %s365
              $region74: #{gae_forward.6} parent=67 // loop_footer_branch
                %364 = sbr.rel target = $region70
              $region75: #{gae_forward.6} parent=67 // loop_exit
                _
            $region68: #{gae_forward.6} parent=59 // pred_fallthru
              _
          $region60: #{gae_forward.6} parent=55 // pred_fallthru
            _
          %424 = vnop
        $region56: #{gae_forward.6} parent=39 // pred_fallthru
          _
      $region40: #{gae_forward.6} parent=5 // pred_fallthru
        _
      %p425 = scmp.le.s32.totalorder 1, %s16
      %p426 = scmp.lt.s32.totalorder %s16, 5
      %p427 = pnand %p425, %p426
      %p428 = pneg %p427
      // Predicated region
      $region94: #{gae_forward.6} parent=5 // pred_check
        _
      $region95: #{gae_forward.6} parent=5 // pred_check_branch
        %430 = sbr.rel (%p427) target = $region97
      $region96: #{gae_forward.6} parent=5 // pred_region
        %s431 = ssub.s32 %s16, 1
        %s432 = sand.u32 %s121, 1
        %s433 = sand.u32 %s121, 1
        %s434 = smul.addr %s433, 32
        %s435 = scalar_lea.vmem [#allocation6], %s434
        // Predicated region
        $region98: #{gae_forward.6} parent=96 // pred_check
          %p436 = pneg %p134
        $region99: #{gae_forward.6} parent=96 // pred_check_branch
          %438 = sbr.rel (%p436) target = $region101
        $region100: #{gae_forward.6} parent=96 // pred_region
          _
        $region101: #{gae_forward.6} parent=96 // pred_fallthru
          _
        %p439 = scmp.lt.s32.totalorder %s26, 1
        %s440 = scalar_select %p439, %s26, 1
        %s441 = smul.addr %s440, 8
        %s442 = scalar_lea.vmem %s0, %s441
        %p443 = pneg %p54
        %p444 = pneg %p51
        %p445 = scmp.lt.s32.totalorder %s25, 1
        %s446 = scalar_select %p445, %s25, 1
        %s447 = smul.addr %s446, 8
        %s448 = scalar_lea.vmem %s1, %s447
        %p449 = pneg %p80
        %p450 = pneg %p77
        %p451 = scmp.lt.s32.totalorder %s25, 1
        %s452 = scalar_select %p451, %s25, 1
        %s453 = smul.addr %s452, 8
        %s454 = scalar_lea.vmem %s2, %s453
        %p455 = pneg %p106
        %p456 = pneg %p103
        %s457 = sand.u32 %s121, 1
        %s458 = sand.u32 %s121, 1
        %s459 = smul.addr %s458, 32
        %s460 = scalar_lea.vmem [#allocation6], %s459
        %p461 = pneg %p134
        %p462 = pneg %p131
        %p463 = pneg %p155
        %p464 = pneg %p152
        %p465 = pneg %p176
        %p466 = pneg %p173
        %p467 = pneg %p197
        %p468 = pneg %p194
        %p469 = pneg %p218
        %p470 = pneg %p215
        %p471 = pneg %p239
        %p472 = pneg %p236
        %p473 = pneg %p260
        %p474 = pneg %p257
        %p475 = pneg %p286
        %p476 = pneg %p283
        %p477 = scmp.lt.s32.totalorder %s25, 1
        %s478 = scalar_select %p477, %s25, 1
        %s479 = smul.addr %s478, 8
        %s480 = scalar_lea.vmem %s10, %s479
        %p481 = scmp.lt.s32.totalorder %s26, 1
        %s482 = scalar_select %p481, %s26, 1
        %s483 = smul.addr %s482, 8
        %s484 = scalar_lea.vmem %s0, %s483
        %p485 = scmp.lt.s32.totalorder %s25, 1
        %s486 = scalar_select %p485, %s25, 1
        %s487 = smul.addr %s486, 8
        %s488 = scalar_lea.vmem %s1, %s487
        %p489 = scmp.lt.s32.totalorder %s25, 1
        %s490 = scalar_select %p489, %s25, 1
        %s491 = smul.addr %s490, 8
        %s492 = scalar_lea.vmem %s2, %s491
        %s493 = smul.u32 8, %s25
        %p494 = scmp.lt.s32.totalorder %s25, 1
        %s495 = scalar_select %p494, %s25, 1
        %s496 = smul.addr %s495, 8
        %s497 = scalar_lea.vmem %s10, %s496
        %p499 = scmp.eq.s32.totalorder %s26, 0
        // Predicated region
        $region102: #{gae_forward.6} parent=96 // pred_check
          %p500 = pneg %p499
        $region103: #{gae_forward.6} parent=96 // pred_check_branch
          %502 = sbr.rel (%p500) target = $region105
        $region104: #{gae_forward.6} parent=96 // pred_region
          %503 = vst [vmem:[#allocation2] sm:$0xff] 0.0
          %504 = vst [vmem:[#allocation3] sm:$0xff] 0.0
          %505 = vst [vmem:[#allocation4] sm:$0xff] 0.0
          %506 = vst [vmem:[#allocation5] sm:$0xff] 1e+30
        $region105: #{gae_forward.6} parent=96 // pred_fallthru
          _
        %v507 = vld [vmem:[%s435] sm:$0xf]
        %v508 = vld [vmem:[%s435 + $0x4] sm:$0xf]
        %v509 = vld [vmem:[%s435 + $0x8] sm:$0xf]
        %v510 = vld [vmem:[%s435 + $0xc] sm:$0xf]
        %v511 = vld [vmem:[%s435 + $0x10] sm:$0xf]
        %v512 = vld [vmem:[%s435 + $0x14] sm:$0xf]
        %v513 = vld [vmem:[%s435 + $0x18] sm:$0xf]
        %v514 = vld [vmem:[%s435 + $0x1c] sm:$0xf]
        %v515 = vld [vmem:[%s4] sm:$0x7]
        %v524 = vunpack.c.l.b16 %v507
        %v525 = vunpack.c.l.b16 %v508
        %v526 = vunpack.c.l.b16 %v509
        %v527 = vunpack.c.l.b16 %v510
        %v528 = vunpack.c.l.b16 %v511
        %v529 = vunpack.c.l.b16 %v512
        %v530 = vunpack.c.l.b16 %v513
        %v531 = vunpack.c.l.b16 %v514
        %v532 = vpack.c.b16 %v525, %v524
        %v533 = vpack.c.b16 %v527, %v526
        %v534 = vpack.c.b16 %v529, %v528
        %v535 = vpack.c.b16 %v531, %v530
        %vm536 = vcmask 39936
        %v538 = vsel %vm536, %v532, 0
        %v541 = vsel %vm536, %v533, 0
        %v544 = vsel %vm536, %v534, 0
        %v547 = vsel %vm536, %v535, 0
        %vm549 = vcmask 1041408
        %vm550 = vcmask 1042432
        %v551 = vsel %vm549, 4294967295, 65535
        %v552 = vsel %vm550, %v551, 0
        %v554 = vand.u32 %v515, %v552
        %556 = vmatpush.bf16.msra.mxu0 0
        %557 = vmatpush.bf16.msra.mxu0 0
        %558 = vmatpush.bf16.msra.mxu0 0
        %559 = vmatpush.bf16.msra.mxu0 0
        %560 = vmatpush.bf16.msra.mxu0 0
        %561 = vmatpush.bf16.msra.mxu0 0
        %562 = vmatpush.bf16.msra.mxu0 0
        %563 = vmatpush.bf16.msra.mxu0 %v554
        %564 = vmatmul.bf16.gmra.mxu0 %v538
        %v565 = vpop.f32.mrf.mxu0
        %v566 = vadd.f32 0.0, %v565
        %v567 = vpop.f32.mrf.mxu0
        %v568 = vadd.f32 0.0, %v567
        %569 = vmatmul.bf16.gmra.mxu0 %v541
        %v570 = vpop.f32.mrf.mxu0
        %v571 = vadd.f32 0.0, %v570
        %v572 = vpop.f32.mrf.mxu0
        %v573 = vadd.f32 0.0, %v572
        %574 = vmatmul.bf16.gmra.mxu0 %v544
        %v575 = vpop.f32.mrf.mxu0
        %v576 = vadd.f32 0.0, %v575
        %v577 = vpop.f32.mrf.mxu0
        %v578 = vadd.f32 0.0, %v577
        %579 = vmatmul.bf16.gmra.mxu0 %v547
        %v580 = vpop.f32.mrf.mxu0
        %v581 = vadd.f32 0.0, %v580
        %v582 = vpop.f32.mrf.mxu0
        %v583 = vadd.f32 0.0, %v582
        %584 = vdwg.mxu0
        %v585 = vpack.c.bf16 %v566, %v566
        %v586 = vpack.c.bf16 %v568, %v568
        %v587 = vpack.c.bf16 %v571, %v571
        %v588 = vpack.c.bf16 %v573, %v573
        %v589 = vpack.c.bf16 %v576, %v576
        %v590 = vpack.c.bf16 %v578, %v578
        %v591 = vpack.c.bf16 %v581, %v581
        %v592 = vpack.c.bf16 %v583, %v583
        %v593 = vld [vmem:[%s484] sm:$0xff]
        %v594 = vld [vmem:[%s5] sm:$0x1]
        %v596 = vperm.slane %v594, 0
        %v598 = vadd.f32 %v593, %v596
        %v599 = vpack.c.bf16 %v598, %v598
        %v600 = vunpack.c.l.bf16 %v585
        %v601 = vunpack.c.l.bf16 %v586
        %v602 = vunpack.c.l.bf16 %v587
        %v603 = vunpack.c.l.bf16 %v588
        %v604 = vunpack.c.l.bf16 %v589
        %v605 = vunpack.c.l.bf16 %v590
        %v606 = vunpack.c.l.bf16 %v591
        %v607 = vunpack.c.l.bf16 %v592
        %v608 = vunpack.c.l.bf16 %v599
        %v609 = vadd.f32 %v600, %v608
        %v610 = vadd.f32 %v601, %v608
        %v611 = vadd.f32 %v602, %v608
        %v612 = vadd.f32 %v603, %v608
        %v613 = vadd.f32 %v604, %v608
        %v614 = vadd.f32 %v605, %v608
        %v615 = vadd.f32 %v606, %v608
        %v616 = vadd.f32 %v607, %v608
        %v617 = vpack.c.bf16 %v609, %v609
        %v618 = vpack.c.bf16 %v610, %v610
        %v619 = vpack.c.bf16 %v611, %v611
        %v620 = vpack.c.bf16 %v612, %v612
        %v621 = vpack.c.bf16 %v613, %v613
        %v622 = vpack.c.bf16 %v614, %v614
        %v623 = vpack.c.bf16 %v615, %v615
        %v624 = vpack.c.bf16 %v616, %v616
        %v625 = vunpack.c.l.bf16 %v617
        %v626 = vunpack.c.l.bf16 %v618
        %v627 = vunpack.c.l.bf16 %v619
        %v628 = vunpack.c.l.bf16 %v620
        %v629 = vunpack.c.l.bf16 %v621
        %v630 = vunpack.c.l.bf16 %v622
        %v631 = vunpack.c.l.bf16 %v623
        %v632 = vunpack.c.l.bf16 %v624
        %v633 = vmax.f32 %v625, 0.0
        %v634 = vmax.f32 %v626, 0.0
        %v635 = vmax.f32 %v627, 0.0
        %v636 = vmax.f32 %v628, 0.0
        %v637 = vmax.f32 %v629, 0.0
        %v638 = vmax.f32 %v630, 0.0
        %v639 = vmax.f32 %v631, 0.0
        %v640 = vmax.f32 %v632, 0.0
        %v641 = vpack.c.bf16 %v633, %v633
        %v642 = vpack.c.bf16 %v634, %v634
        %v643 = vpack.c.bf16 %v635, %v635
        %v644 = vpack.c.bf16 %v636, %v636
        %v645 = vpack.c.bf16 %v637, %v637
        %v646 = vpack.c.bf16 %v638, %v638
        %v647 = vpack.c.bf16 %v639, %v639
        %v648 = vpack.c.bf16 %v640, %v640
        %v649 = vld [vmem:[#allocation2] sm:$0xff]
        %v650 = vunpack.c.l.bf16 %v641
        %v651 = vunpack.c.l.bf16 %v642
        %v652 = vunpack.c.l.bf16 %v643
        %v653 = vunpack.c.l.bf16 %v644
        %v654 = vunpack.c.l.bf16 %v645
        %v655 = vunpack.c.l.bf16 %v646
        %v656 = vunpack.c.l.bf16 %v647
        %v657 = vunpack.c.l.bf16 %v648
        %v658 = vrot.slane %v650, 4
        %v659 = vadd.f32 %v650, %v658
        %v660 = vrot.slane %v659, 2
        %v661 = vadd.f32 %v659, %v660
        %v662 = vrot.slane %v661, 1
        %v663 = vadd.f32 %v661, %v662
        %v664 = vrot.slane %v651, 4
        %v665 = vadd.f32 %v651, %v664
        %v666 = vrot.slane %v665, 2
        %v667 = vadd.f32 %v665, %v666
        %v668 = vrot.slane %v667, 1
        %v669 = vadd.f32 %v667, %v668
        %v670 = vrot.slane %v652, 4
        %v671 = vadd.f32 %v652, %v670
        %v672 = vrot.slane %v671, 2
        %v673 = vadd.f32 %v671, %v672
        %v674 = vrot.slane %v673, 1
        %v675 = vadd.f32 %v673, %v674
        %v676 = vrot.slane %v653, 4
        %v677 = vadd.f32 %v653, %v676
        %v678 = vrot.slane %v677, 2
        %v679 = vadd.f32 %v677, %v678
        %v680 = vrot.slane %v679, 1
        %v681 = vadd.f32 %v679, %v680
        %v682 = vrot.slane %v654, 4
        %v683 = vadd.f32 %v654, %v682
        %v684 = vrot.slane %v683, 2
        %v685 = vadd.f32 %v683, %v684
        %v686 = vrot.slane %v685, 1
        %v687 = vadd.f32 %v685, %v686
        %v688 = vrot.slane %v655, 4
        %v689 = vadd.f32 %v655, %v688
        %v690 = vrot.slane %v689, 2
        %v691 = vadd.f32 %v689, %v690
        %v692 = vrot.slane %v691, 1
        %v693 = vadd.f32 %v691, %v692
        %v694 = vrot.slane %v656, 4
        %v695 = vadd.f32 %v656, %v694
        %v696 = vrot.slane %v695, 2
        %v697 = vadd.f32 %v695, %v696
        %v698 = vrot.slane %v697, 1
        %v699 = vadd.f32 %v697, %v698
        %v700 = vrot.slane %v657, 4
        %v701 = vadd.f32 %v657, %v700
        %v702 = vrot.slane %v701, 2
        %v703 = vadd.f32 %v701, %v702
        %v704 = vrot.slane %v703, 1
        %v705 = vadd.f32 %v703, %v704
        %vm714 = vcmask 1041409
        %v715 = vsel %vm714, %v669, %v663
        %vm716 = vcmask 1042434
        %v717 = vsel %vm716, %v675, %v715
        %vm718 = vcmask 1043459
        %v719 = vsel %vm718, %v681, %v717
        %vm720 = vcmask 1044484
        %v721 = vsel %vm720, %v687, %v719
        %vm722 = vcmask 1045509
        %v723 = vsel %vm722, %v693, %v721
        %vm724 = vcmask 1046534
        %v725 = vsel %vm724, %v699, %v723
        %vm726 = vcmask 1047559
        %v727 = vsel %vm726, %v705, %v725
        %v729 = vadd.f32 %v649, %v727
        %730 = vst [vmem:[#allocation2] sm:$0xff] %v729
        %v731 = vld [vmem:[#allocation3] sm:$0xff]
        %v732 = vmul.f32 %v650, %v650
        %v733 = vmul.f32 %v651, %v651
        %v734 = vmul.f32 %v652, %v652
        %v735 = vmul.f32 %v653, %v653
        %v736 = vmul.f32 %v654, %v654
        %v737 = vmul.f32 %v655, %v655
        %v738 = vmul.f32 %v656, %v656
        %v739 = vmul.f32 %v657, %v657
        %v740 = vpack.c.bf16 %v732, %v732
        %v741 = vpack.c.bf16 %v733, %v733
        %v742 = vpack.c.bf16 %v734, %v734
        %v743 = vpack.c.bf16 %v735, %v735
        %v744 = vpack.c.bf16 %v736, %v736
        %v745 = vpack.c.bf16 %v737, %v737
        %v746 = vpack.c.bf16 %v738, %v738
        %v747 = vpack.c.bf16 %v739, %v739
        %v748 = vunpack.c.l.bf16 %v740
        %v749 = vunpack.c.l.bf16 %v741
        %v750 = vunpack.c.l.bf16 %v742
        %v751 = vunpack.c.l.bf16 %v743
        %v752 = vunpack.c.l.bf16 %v744
        %v753 = vunpack.c.l.bf16 %v745
        %v754 = vunpack.c.l.bf16 %v746
        %v755 = vunpack.c.l.bf16 %v747
        %v756 = vrot.slane %v748, 4
        %v757 = vadd.f32 %v748, %v756
        %v758 = vrot.slane %v757, 2
        %v759 = vadd.f32 %v757, %v758
        %v760 = vrot.slane %v759, 1
        %v761 = vadd.f32 %v759, %v760
        %v762 = vrot.slane %v749, 4
        %v763 = vadd.f32 %v749, %v762
        %v764 = vrot.slane %v763, 2
        %v765 = vadd.f32 %v763, %v764
        %v766 = vrot.slane %v765, 1
        %v767 = vadd.f32 %v765, %v766
        %v768 = vrot.slane %v750, 4
        %v769 = vadd.f32 %v750, %v768
        %v770 = vrot.slane %v769, 2
        %v771 = vadd.f32 %v769, %v770
        %v772 = vrot.slane %v771, 1
        %v773 = vadd.f32 %v771, %v772
        %v774 = vrot.slane %v751, 4
        %v775 = vadd.f32 %v751, %v774
        %v776 = vrot.slane %v775, 2
        %v777 = vadd.f32 %v775, %v776
        %v778 = vrot.slane %v777, 1
        %v779 = vadd.f32 %v777, %v778
        %v780 = vrot.slane %v752, 4
        %v781 = vadd.f32 %v752, %v780
        %v782 = vrot.slane %v781, 2
        %v783 = vadd.f32 %v781, %v782
        %v784 = vrot.slane %v783, 1
        %v785 = vadd.f32 %v783, %v784
        %v786 = vrot.slane %v753, 4
        %v787 = vadd.f32 %v753, %v786
        %v788 = vrot.slane %v787, 2
        %v789 = vadd.f32 %v787, %v788
        %v790 = vrot.slane %v789, 1
        %v791 = vadd.f32 %v789, %v790
        %v792 = vrot.slane %v754, 4
        %v793 = vadd.f32 %v754, %v792
        %v794 = vrot.slane %v793, 2
        %v795 = vadd.f32 %v793, %v794
        %v796 = vrot.slane %v795, 1
        %v797 = vadd.f32 %v795, %v796
        %v798 = vrot.slane %v755, 4
        %v799 = vadd.f32 %v755, %v798
        %v800 = vrot.slane %v799, 2
        %v801 = vadd.f32 %v799, %v800
        %v802 = vrot.slane %v801, 1
        %v803 = vadd.f32 %v801, %v802
        %v812 = vsel %vm714, %v767, %v761
        %v813 = vsel %vm716, %v773, %v812
        %v814 = vsel %vm718, %v779, %v813
        %v815 = vsel %vm720, %v785, %v814
        %v816 = vsel %vm722, %v791, %v815
        %v817 = vsel %vm724, %v797, %v816
        %v818 = vsel %vm726, %v803, %v817
        %v820 = vadd.f32 %v731, %v818
        %821 = vst [vmem:[#allocation3] sm:$0xff] %v820
        %v822 = vld [vmem:[#allocation4] sm:$0xff]
        %v823 = vrot.slane %v650, 4
        %v824 = vmax.f32 %v650, %v823
        %v825 = vrot.slane %v824, 2
        %v826 = vmax.f32 %v824, %v825
        %v827 = vrot.slane %v826, 1
        %v828 = vmax.f32 %v826, %v827
        %v829 = vrot.slane %v651, 4
        %v830 = vmax.f32 %v651, %v829
        %v831 = vrot.slane %v830, 2
        %v832 = vmax.f32 %v830, %v831
        %v833 = vrot.slane %v832, 1
        %v834 = vmax.f32 %v832, %v833
        %v835 = vrot.slane %v652, 4
        %v836 = vmax.f32 %v652, %v835
        %v837 = vrot.slane %v836, 2
        %v838 = vmax.f32 %v836, %v837
        %v839 = vrot.slane %v838, 1
        %v840 = vmax.f32 %v838, %v839
        %v841 = vrot.slane %v653, 4
        %v842 = vmax.f32 %v653, %v841
        %v843 = vrot.slane %v842, 2
        %v844 = vmax.f32 %v842, %v843
        %v845 = vrot.slane %v844, 1
        %v846 = vmax.f32 %v844, %v845
        %v847 = vrot.slane %v654, 4
        %v848 = vmax.f32 %v654, %v847
        %v849 = vrot.slane %v848, 2
        %v850 = vmax.f32 %v848, %v849
        %v851 = vrot.slane %v850, 1
        %v852 = vmax.f32 %v850, %v851
        %v853 = vrot.slane %v655, 4
        %v854 = vmax.f32 %v655, %v853
        %v855 = vrot.slane %v854, 2
        %v856 = vmax.f32 %v854, %v855
        %v857 = vrot.slane %v856, 1
        %v858 = vmax.f32 %v856, %v857
        %v859 = vrot.slane %v656, 4
        %v860 = vmax.f32 %v656, %v859
        %v861 = vrot.slane %v860, 2
        %v862 = vmax.f32 %v860, %v861
        %v863 = vrot.slane %v862, 1
        %v864 = vmax.f32 %v862, %v863
        %v865 = vrot.slane %v657, 4
        %v866 = vmax.f32 %v657, %v865
        %v867 = vrot.slane %v866, 2
        %v868 = vmax.f32 %v866, %v867
        %v869 = vrot.slane %v868, 1
        %v870 = vmax.f32 %v868, %v869
        %v871 = vpack.c.bf16 %v828, %v828
        %v872 = vpack.c.bf16 %v834, %v834
        %v873 = vpack.c.bf16 %v840, %v840
        %v874 = vpack.c.bf16 %v846, %v846
        %v875 = vpack.c.bf16 %v852, %v852
        %v876 = vpack.c.bf16 %v858, %v858
        %v877 = vpack.c.bf16 %v864, %v864
        %v878 = vpack.c.bf16 %v870, %v870
        %v879 = vunpack.c.l.bf16 %v871
        %v880 = vunpack.c.l.bf16 %v872
        %v881 = vunpack.c.l.bf16 %v873
        %v882 = vunpack.c.l.bf16 %v874
        %v883 = vunpack.c.l.bf16 %v875
        %v884 = vunpack.c.l.bf16 %v876
        %v885 = vunpack.c.l.bf16 %v877
        %v886 = vunpack.c.l.bf16 %v878
        %v895 = vsel %vm714, %v880, %v879
        %v896 = vsel %vm716, %v881, %v895
        %v897 = vsel %vm718, %v882, %v896
        %v898 = vsel %vm720, %v883, %v897
        %v899 = vsel %vm722, %v884, %v898
        %v900 = vsel %vm724, %v885, %v899
        %v901 = vsel %vm726, %v886, %v900
        %v903 = vmax.f32 %v822, %v901
        %904 = vst [vmem:[#allocation4] sm:$0xff] %v903
        %vm905 = vcmp.gt.f32.partialorder %v625, -5.0012778e+29
        %vm906 = vcmp.gt.f32.partialorder %v626, -5.0012778e+29
        %vm907 = vcmp.gt.f32.partialorder %v627, -5.0012778e+29
        %vm908 = vcmp.gt.f32.partialorder %v628, -5.0012778e+29
        %vm909 = vcmp.gt.f32.partialorder %v629, -5.0012778e+29
        %vm910 = vcmp.gt.f32.partialorder %v630, -5.0012778e+29
        %vm911 = vcmp.gt.f32.partialorder %v631, -5.0012778e+29
        %vm912 = vcmp.gt.f32.partialorder %v632, -5.0012778e+29
        %p914 = scmp.ne.f32.partialorder 1e+30, 1e+30
        %s915 = sshrl.u32 1e+30, 16
        %s916 = sand.u32 %s915, 1
        %s917 = sadd.s32 32767, %s916
        %s918 = sadd.s32 1e+30, %s917
        %s919 = sand.u32 %s918, 4294901760
        %s920 = scalar_select %p914, 2143289344, %s919
        %s922 = sshrl.u32 %s920, 16
        %s923 = sshll.u32 %s922, 16
        %s924 = sor.u32 %s922, %s923
        %v925 = vstv %s924
        %vm927 = vmpackc.low %vm905, %vm905
        %vm928 = vmpackc.low %vm906, %vm906
        %vm929 = vmpackc.low %vm907, %vm907
        %vm930 = vmpackc.low %vm908, %vm908
        %vm931 = vmpackc.low %vm909, %vm909
        %vm932 = vmpackc.low %vm910, %vm910
        %vm933 = vmpackc.low %vm911, %vm911
        %vm934 = vmpackc.low %vm912, %vm912
        %v935 = vsel %vm927, %v641, %v925
        %v936 = vsel %vm928, %v642, %v925
        %v937 = vsel %vm929, %v643, %v925
        %v938 = vsel %vm930, %v644, %v925
        %v939 = vsel %vm931, %v645, %v925
        %v940 = vsel %vm932, %v646, %v925
        %v941 = vsel %vm933, %v647, %v925
        %v942 = vsel %vm934, %v648, %v925
        %v943 = vld [vmem:[#allocation5] sm:$0xff]
        %v944 = vunpack.c.l.bf16 %v935
        %v945 = vunpack.c.l.bf16 %v936
        %v946 = vunpack.c.l.bf16 %v937
        %v947 = vunpack.c.l.bf16 %v938
        %v948 = vunpack.c.l.bf16 %v939
        %v949 = vunpack.c.l.bf16 %v940
        %v950 = vunpack.c.l.bf16 %v941
        %v951 = vunpack.c.l.bf16 %v942
        %v952 = vrot.slane %v944, 4
        %v953 = vmin.f32 %v944, %v952
        %v954 = vrot.slane %v953, 2
        %v955 = vmin.f32 %v953, %v954
        %v956 = vrot.slane %v955, 1
        %v957 = vmin.f32 %v955, %v956
        %v958 = vrot.slane %v945, 4
        %v959 = vmin.f32 %v945, %v958
        %v960 = vrot.slane %v959, 2
        %v961 = vmin.f32 %v959, %v960
        %v962 = vrot.slane %v961, 1
        %v963 = vmin.f32 %v961, %v962
        %v964 = vrot.slane %v946, 4
        %v965 = vmin.f32 %v946, %v964
        %v966 = vrot.slane %v965, 2
        %v967 = vmin.f32 %v965, %v966
        %v968 = vrot.slane %v967, 1
        %v969 = vmin.f32 %v967, %v968
        %v970 = vrot.slane %v947, 4
        %v971 = vmin.f32 %v947, %v970
        %v972 = vrot.slane %v971, 2
        %v973 = vmin.f32 %v971, %v972
        %v974 = vrot.slane %v973, 1
        %v975 = vmin.f32 %v973, %v974
        %v976 = vrot.slane %v948, 4
        %v977 = vmin.f32 %v948, %v976
        %v978 = vrot.slane %v977, 2
        %v979 = vmin.f32 %v977, %v978
        %v980 = vrot.slane %v979, 1
        %v981 = vmin.f32 %v979, %v980
        %v982 = vrot.slane %v949, 4
        %v983 = vmin.f32 %v949, %v982
        %v984 = vrot.slane %v983, 2
        %v985 = vmin.f32 %v983, %v984
        %v986 = vrot.slane %v985, 1
        %v987 = vmin.f32 %v985, %v986
        %v988 = vrot.slane %v950, 4
        %v989 = vmin.f32 %v950, %v988
        %v990 = vrot.slane %v989, 2
        %v991 = vmin.f32 %v989, %v990
        %v992 = vrot.slane %v991, 1
        %v993 = vmin.f32 %v991, %v992
        %v994 = vrot.slane %v951, 4
        %v995 = vmin.f32 %v951, %v994
        %v996 = vrot.slane %v995, 2
        %v997 = vmin.f32 %v995, %v996
        %v998 = vrot.slane %v997, 1
        %v999 = vmin.f32 %v997, %v998
        %v1000 = vpack.c.bf16 %v957, %v957
        %v1001 = vpack.c.bf16 %v963, %v963
        %v1002 = vpack.c.bf16 %v969, %v969
        %v1003 = vpack.c.bf16 %v975, %v975
        %v1004 = vpack.c.bf16 %v981, %v981
        %v1005 = vpack.c.bf16 %v987, %v987
        %v1006 = vpack.c.bf16 %v993, %v993
        %v1007 = vpack.c.bf16 %v999, %v999
        %v1008 = vunpack.c.l.bf16 %v1000
        %v1009 = vunpack.c.l.bf16 %v1001
        %v1010 = vunpack.c.l.bf16 %v1002
        %v1011 = vunpack.c.l.bf16 %v1003
        %v1012 = vunpack.c.l.bf16 %v1004
        %v1013 = vunpack.c.l.bf16 %v1005
        %v1014 = vunpack.c.l.bf16 %v1006
        %v1015 = vunpack.c.l.bf16 %v1007
        %v1024 = vsel %vm714, %v1009, %v1008
        %v1025 = vsel %vm716, %v1010, %v1024
        %v1026 = vsel %vm718, %v1011, %v1025
        %v1027 = vsel %vm720, %v1012, %v1026
        %v1028 = vsel %vm722, %v1013, %v1027
        %v1029 = vsel %vm724, %v1014, %v1028
        %v1030 = vsel %vm726, %v1015, %v1029
        %v1032 = vmin.f32 %v943, %v1030
        %1033 = vst [vmem:[#allocation5] sm:$0xff] %v1032
        %p1034 = scmp.eq.s32.totalorder %s26, 1
        // Predicated region
        $region106: #{gae_forward.6} parent=96 // pred_check
          %p1035 = pneg %p1034
        $region107: #{gae_forward.6} parent=96 // pred_check_branch
          %1037 = sbr.rel (%p1035) target = $region109
        $region108: #{gae_forward.6} parent=96 // pred_region
          %v1038 = vld [vmem:[%s492] sm:$0xff]
          %vm1039 = vcmp.gt.f32.partialorder %v1038, 0.0
          %v1040 = vmax.f32 %v1038, 1.0
          %v1041 = vrcp.pop %v1040
          %v1042 = vmul.f32 %v1040, %v1041
          %v1043 = vsub.f32 1.0, %v1042
          %v1044 = vmul.f32 %v1041, %v1043
          %v1045 = vadd.f32 %v1041, %v1044
          %vm1046 = vweird.f32 %v1040
          %vm1047 = vweird.f32 %v1041
          %vm1048 = vmor %vm1046, %vm1047
          %v1049 = vsel %vm1048, %v1041, %v1045
          %v1050 = vand.u32 2147483647, %v1040
          %vm1051 = vcmp.eq.f32.partialorder %v1050, 8.507059e+37
          %v1052 = vand.u32 %v1040, 2147483648
          %v1053 = vor.u32 1.1754944e-38, %v1052
          %v1054 = vsel %vm1051, %v1053, %v1049
          %v1055 = vmul.f32 1.0, %v1054
          %v1056 = vld [vmem:[#allocation2] sm:$0xff]
          %1058 = vset.pattern.permute.xlu0 0
          %1059 = vperm.xlu0 %1058, %v1055
          %v1060 = vpop.permute.xlu0 %1059
          %v1062 = vmul.f32 %v1056, %v1060
          %v1063 = vld [vmem:[#allocation3] sm:$0xff]
          %v1064 = vmul.f32 %v1063, %v1060
          %v1065 = vmul.f32 %v1062, %v1062
          %v1066 = vsub.f32 %v1064, %v1065
          %v1067 = vmax.f32 %v1066, 0.0
          %v1068 = vrsqrt.pop %v1067
          %v1069 = vmul.f32 %v1068, %v1067
          %v1070 = vmul.f32 %v1069, %v1068
          %v1071 = vmul.f32 0.5, %v1070
          %v1072 = vsub.f32 1.5, %v1071
          %v1073 = vmul.f32 %v1068, %v1072
          %v1074 = vmul.f32 %v1067, %v1073
          %vm1075 = vcmp.eq.f32.partialorder %v1067, inf
          %v1076 = vsel %vm1075, %v1067, %v1074
          %vm1077 = vcmp.eq.f32.partialorder %v1067, 0.0
          %v1078 = vand.u32 %v1067, 2147483648
          %v1079 = vsel %vm1077, %v1078, %v1076
          %v1080 = vld [vmem:[#allocation4] sm:$0xff]
          %v1081 = vld [vmem:[#allocation5] sm:$0xff]
          %v1082 = vsel %vm1039, 1, 0
          %1083 = vset.pattern.permute.xlu0 0
          %1084 = vperm.xlu0 %1083, %v1082
          %v1085 = vpop.permute.xlu0 %1084
          %vm1086 = vcmp.eq.s32.totalorder %v1085, 1
          %v1087 = vsel %vm1086, %v1081, 0.0
          %v1088 = vpack.c.bf16 %v1062, %v1062
          %v1089 = vpack.c.bf16 %v1080, %v1080
          %v1090 = vpack.c.bf16 %v1087, %v1087
          %v1091 = vpack.c.bf16 %v1079, %v1079
          %v1092 = vld [vmem:[%s6] sm:$0xf]
          %v1093 = vld [vmem:[%s6 + $0x4] sm:$0xf]
          %v1094 = vld [vmem:[%s6 + $0x8] sm:$0xf]
          %v1095 = vld [vmem:[%s6 + $0xc] sm:$0xf]
          %v1096 = vld [vmem:[%s6 + $0x10] sm:$0xf]
          %v1097 = vld [vmem:[%s6 + $0x14] sm:$0xf]
          %v1098 = vld [vmem:[%s6 + $0x18] sm:$0xf]
          %v1099 = vld [vmem:[%s6 + $0x1c] sm:$0xf]
          %v1100 = vld [vmem:[%s6 + $0x20] sm:$0xf]
          %v1101 = vld [vmem:[%s6 + $0x24] sm:$0xf]
          %v1102 = vld [vmem:[%s6 + $0x28] sm:$0xf]
          %v1103 = vld [vmem:[%s6 + $0x2c] sm:$0xf]
          %v1104 = vld [vmem:[%s6 + $0x30] sm:$0xf]
          %v1105 = vld [vmem:[%s6 + $0x34] sm:$0xf]
          %v1106 = vld [vmem:[%s6 + $0x38] sm:$0xf]
          %v1107 = vld [vmem:[%s6 + $0x3c] sm:$0xf]
          %v1108 = vld [vmem:[%s6 + $0x40] sm:$0xf]
          %v1109 = vld [vmem:[%s6 + $0x44] sm:$0xf]
          %v1110 = vld [vmem:[%s6 + $0x48] sm:$0xf]
          %v1111 = vld [vmem:[%s6 + $0x4c] sm:$0xf]
          %v1112 = vld [vmem:[%s6 + $0x50] sm:$0xf]
          %v1113 = vld [vmem:[%s6 + $0x54] sm:$0xf]
          %v1114 = vld [vmem:[%s6 + $0x58] sm:$0xf]
          %v1115 = vld [vmem:[%s6 + $0x5c] sm:$0xf]
          %v1116 = vld [vmem:[%s6 + $0x60] sm:$0xf]
          %v1117 = vld [vmem:[%s6 + $0x64] sm:$0xf]
          %v1118 = vld [vmem:[%s6 + $0x68] sm:$0xf]
          %v1119 = vld [vmem:[%s6 + $0x6c] sm:$0xf]
          %v1120 = vld [vmem:[%s6 + $0x70] sm:$0xf]
          %v1121 = vld [vmem:[%s6 + $0x74] sm:$0xf]
          %v1122 = vld [vmem:[%s6 + $0x78] sm:$0xf]
          %v1123 = vld [vmem:[%s6 + $0x7c] sm:$0xf]
          %v1124 = vld [vmem:[%s6 + $0x80] sm:$0xf]
          %v1125 = vld [vmem:[%s6 + $0x84] sm:$0xf]
          %v1126 = vld [vmem:[%s6 + $0x88] sm:$0xf]
          %v1127 = vld [vmem:[%s6 + $0x8c] sm:$0xf]
          %v1128 = vld [vmem:[%s6 + $0x90] sm:$0xf]
          %v1129 = vld [vmem:[%s6 + $0x94] sm:$0xf]
          %v1130 = vld [vmem:[%s6 + $0x98] sm:$0xf]
          %v1131 = vld [vmem:[%s6 + $0x9c] sm:$0xf]
          %v1132 = vld [vmem:[%s6 + $0xa0] sm:$0xf]
          %v1133 = vld [vmem:[%s6 + $0xa4] sm:$0xf]
          %v1134 = vld [vmem:[%s6 + $0xa8] sm:$0xf]
          %v1135 = vld [vmem:[%s6 + $0xac] sm:$0xf]
          %v1136 = vld [vmem:[%s6 + $0xb0] sm:$0xf]
          %v1137 = vld [vmem:[%s6 + $0xb4] sm:$0xf]
          %v1138 = vld [vmem:[%s6 + $0xb8] sm:$0xf]
          %v1139 = vld [vmem:[%s6 + $0xbc] sm:$0xf]
          %v1140 = vld [vmem:[%s6 + $0xc0] sm:$0xf]
          %v1141 = vld [vmem:[%s6 + $0xc4] sm:$0xf]
          %v1142 = vld [vmem:[%s6 + $0xc8] sm:$0xf]
          %v1143 = vld [vmem:[%s6 + $0xcc] sm:$0xf]
          %v1144 = vld [vmem:[%s6 + $0xd0] sm:$0xf]
          %v1145 = vld [vmem:[%s6 + $0xd4] sm:$0xf]
          %v1146 = vld [vmem:[%s6 + $0xd8] sm:$0xf]
          %v1147 = vld [vmem:[%s6 + $0xdc] sm:$0xf]
          %v1148 = vld [vmem:[%s6 + $0xe0] sm:$0xf]
          %v1149 = vld [vmem:[%s6 + $0xe4] sm:$0xf]
          %v1150 = vld [vmem:[%s6 + $0xe8] sm:$0xf]
          %v1151 = vld [vmem:[%s6 + $0xec] sm:$0xf]
          %v1152 = vld [vmem:[%s6 + $0xf0] sm:$0xf]
          %v1153 = vld [vmem:[%s6 + $0xf4] sm:$0xf]
          %v1154 = vld [vmem:[%s6 + $0xf8] sm:$0xf]
          %v1155 = vld [vmem:[%s6 + $0xfc] sm:$0xf]
          %v1156 = vld [vmem:[%s7] sm:$0x1]
          %v1158 = vperm.slane %v1156, 0
          %v1224 = vunpack.c.l.b16 %v1092
          %v1225 = vunpack.c.l.b16 %v1093
          %v1226 = vunpack.c.l.b16 %v1094
          %v1227 = vunpack.c.l.b16 %v1095
          %v1228 = vunpack.c.l.b16 %v1096
          %v1229 = vunpack.c.l.b16 %v1097
          %v1230 = vunpack.c.l.b16 %v1098
          %v1231 = vunpack.c.l.b16 %v1099
          %v1232 = vunpack.c.l.b16 %v1100
          %v1233 = vunpack.c.l.b16 %v1101
          %v1234 = vunpack.c.l.b16 %v1102
          %v1235 = vunpack.c.l.b16 %v1103
          %v1236 = vunpack.c.l.b16 %v1104
          %v1237 = vunpack.c.l.b16 %v1105
          %v1238 = vunpack.c.l.b16 %v1106
          %v1239 = vunpack.c.l.b16 %v1107
          %v1240 = vunpack.c.l.b16 %v1108
          %v1241 = vunpack.c.l.b16 %v1109
          %v1242 = vunpack.c.l.b16 %v1110
          %v1243 = vunpack.c.l.b16 %v1111
          %v1244 = vunpack.c.l.b16 %v1112
          %v1245 = vunpack.c.l.b16 %v1113
          %v1246 = vunpack.c.l.b16 %v1114
          %v1247 = vunpack.c.l.b16 %v1115
          %v1248 = vunpack.c.l.b16 %v1116
          %v1249 = vunpack.c.l.b16 %v1117
          %v1250 = vunpack.c.l.b16 %v1118
          %v1251 = vunpack.c.l.b16 %v1119
          %v1252 = vunpack.c.l.b16 %v1120
          %v1253 = vunpack.c.l.b16 %v1121
          %v1254 = vunpack.c.l.b16 %v1122
          %v1255 = vunpack.c.l.b16 %v1123
          %v1256 = vunpack.c.l.b16 %v1124
          %v1257 = vunpack.c.l.b16 %v1125
          %v1258 = vunpack.c.l.b16 %v1126
          %v1259 = vunpack.c.l.b16 %v1127
          %v1260 = vunpack.c.l.b16 %v1128
          %v1261 = vunpack.c.l.b16 %v1129
          %v1262 = vunpack.c.l.b16 %v1130
          %v1263 = vunpack.c.l.b16 %v1131
          %v1264 = vunpack.c.l.b16 %v1132
          %v1265 = vunpack.c.l.b16 %v1133
          %v1266 = vunpack.c.l.b16 %v1134
          %v1267 = vunpack.c.l.b16 %v1135
          %v1268 = vunpack.c.l.b16 %v1136
          %v1269 = vunpack.c.l.b16 %v1137
          %v1270 = vunpack.c.l.b16 %v1138
          %v1271 = vunpack.c.l.b16 %v1139
          %v1272 = vunpack.c.l.b16 %v1140
          %v1273 = vunpack.c.l.b16 %v1141
          %v1274 = vunpack.c.l.b16 %v1142
          %v1275 = vunpack.c.l.b16 %v1143
          %v1276 = vunpack.c.l.b16 %v1144
          %v1277 = vunpack.c.l.b16 %v1145
          %v1278 = vunpack.c.l.b16 %v1146
          %v1279 = vunpack.c.l.b16 %v1147
          %v1280 = vunpack.c.l.b16 %v1148
          %v1281 = vunpack.c.l.b16 %v1149
          %v1282 = vunpack.c.l.b16 %v1150
          %v1283 = vunpack.c.l.b16 %v1151
          %v1284 = vunpack.c.l.b16 %v1152
          %v1285 = vunpack.c.l.b16 %v1153
          %v1286 = vunpack.c.l.b16 %v1154
          %v1287 = vunpack.c.l.b16 %v1155
          %v1288 = vpack.c.b16 %v1225, %v1224
          %v1289 = vpack.c.b16 %v1227, %v1226
          %v1290 = vpack.c.b16 %v1229, %v1228
          %v1291 = vpack.c.b16 %v1231, %v1230
          %v1292 = vpack.c.b16 %v1233, %v1232
          %v1293 = vpack.c.b16 %v1235, %v1234
          %v1294 = vpack.c.b16 %v1237, %v1236
          %v1295 = vpack.c.b16 %v1239, %v1238
          %v1296 = vpack.c.b16 %v1241, %v1240
          %v1297 = vpack.c.b16 %v1243, %v1242
          %v1298 = vpack.c.b16 %v1245, %v1244
          %v1299 = vpack.c.b16 %v1247, %v1246
          %v1300 = vpack.c.b16 %v1249, %v1248
          %v1301 = vpack.c.b16 %v1251, %v1250
          %v1302 = vpack.c.b16 %v1253, %v1252
          %v1303 = vpack.c.b16 %v1255, %v1254
          %v1304 = vpack.c.b16 %v1257, %v1256
          %v1305 = vpack.c.b16 %v1259, %v1258
          %v1306 = vpack.c.b16 %v1261, %v1260
          %v1307 = vpack.c.b16 %v1263, %v1262
          %v1308 = vpack.c.b16 %v1265, %v1264
          %v1309 = vpack.c.b16 %v1267, %v1266
          %v1310 = vpack.c.b16 %v1269, %v1268
          %v1311 = vpack.c.b16 %v1271, %v1270
          %v1312 = vpack.c.b16 %v1273, %v1272
          %v1313 = vpack.c.b16 %v1275, %v1274
          %v1314 = vpack.c.b16 %v1277, %v1276
          %v1315 = vpack.c.b16 %v1279, %v1278
          %v1316 = vpack.c.b16 %v1281, %v1280
          %v1317 = vpack.c.b16 %v1283, %v1282
          %v1318 = vpack.c.b16 %v1285, %v1284
          %v1319 = vpack.c.b16 %v1287, %v1286
          %1352 = vmatpush.bf16.msra.mxu0 %v1295
          %1353 = vmatpush.bf16.msra.mxu0 %v1294
          %1354 = vmatpush.bf16.msra.mxu0 %v1293
          %1355 = vmatpush.bf16.msra.mxu0 %v1292
          %1356 = vmatpush.bf16.msra.mxu0 %v1291
          %1357 = vmatpush.bf16.msra.mxu0 %v1290
          %1358 = vmatpush.bf16.msra.mxu0 %v1289
          %1359 = vmatpush.bf16.msra.mxu0 %v1288
          %1360 = vmatmul.bf16.gmra.mxu0 %v1088
          %v1361 = vpop.f32.mrf.mxu0
          %v1362 = vadd.f32 %v1158, %v1361
          %v1363 = vpop.f32.mrf.mxu0
          %1364 = vdwg.mxu0
          %1365 = vmatpush.bf16.msra.mxu0 %v1303
          %1366 = vmatpush.bf16.msra.mxu0 %v1302
          %1367 = vmatpush.bf16.msra.mxu0 %v1301
          %1368 = vmatpush.bf16.msra.mxu0 %v1300
          %1369 = vmatpush.bf16.msra.mxu0 %v1299
          %1370 = vmatpush.bf16.msra.mxu0 %v1298
          %1371 = vmatpush.bf16.msra.mxu0 %v1297
          %1372 = vmatpush.bf16.msra.mxu0 %v1296
          %1373 = vmatmul.bf16.gmra.mxu0 %v1089
          %v1374 = vpop.f32.mrf.mxu0
          %v1375 = vadd.f32 %v1362, %v1374
          %v1376 = vpop.f32.mrf.mxu0
          %1377 = vdwg.mxu0
          %1378 = vmatpush.bf16.msra.mxu0 %v1311
          %1379 = vmatpush.bf16.msra.mxu0 %v1310
          %1380 = vmatpush.bf16.msra.mxu0 %v1309
          %1381 = vmatpush.bf16.msra.mxu0 %v1308
          %1382 = vmatpush.bf16.msra.mxu0 %v1307
          %1383 = vmatpush.bf16.msra.mxu0 %v1306
          %1384 = vmatpush.bf16.msra.mxu0 %v1305
          %1385 = vmatpush.bf16.msra.mxu0 %v1304
          %1386 = vmatmul.bf16.gmra.mxu0 %v1090
          %v1387 = vpop.f32.mrf.mxu0
          %v1388 = vadd.f32 %v1375, %v1387
          %v1389 = vpop.f32.mrf.mxu0
          %1390 = vdwg.mxu0
          %1391 = vmatpush.bf16.msra.mxu0 %v1319
          %1392 = vmatpush.bf16.msra.mxu0 %v1318
          %1393 = vmatpush.bf16.msra.mxu0 %v1317
          %1394 = vmatpush.bf16.msra.mxu0 %v1316
          %1395 = vmatpush.bf16.msra.mxu0 %v1315
          %1396 = vmatpush.bf16.msra.mxu0 %v1314
          %1397 = vmatpush.bf16.msra.mxu0 %v1313
          %1398 = vmatpush.bf16.msra.mxu0 %v1312
          %1399 = vmatmul.bf16.gmra.mxu0 %v1091
          %v1400 = vpop.f32.mrf.mxu0
          %v1401 = vadd.f32 %v1388, %v1400
          %v1402 = vpop.f32.mrf.mxu0
          %1403 = vdwg.mxu0
          %v1404 = vld [vmem:[%s8] sm:$0x1]
          %v1406 = vperm.slane %v1404, 0
          %v1408 = vmul.f32 %v1401, %v1406
          %v1409 = vld [vmem:[%s9] sm:$0x1]
          %v1411 = vperm.slane %v1409, 0
          %v1413 = vadd.f32 %v1408, %v1411
          %v1414 = vmax.f32 %v1413, 0.0
          %v1415 = vld [vmem:[%s488] sm:$0xff]
          %v1416 = vadd.f32 %v1415, %v1414
          %1417 = vst [vmem:[%s497] sm:$0xff] %v1416
        $region109: #{gae_forward.6} parent=96 // pred_fallthru
          _
        %p1418 = scmp.lt.s32.totalorder %s25, 1
        %s1419 = scalar_select %p1418, %s25, 1
        %s1420 = smul.addr %s1419, 8
        %s1421 = scalar_lea.vmem %s10, %s1420
        // Predicated region
        $region110: #{gae_forward.6} parent=96 // pred_check
          %p1422 = pneg %p283
        $region111: #{gae_forward.6} parent=96 // pred_check_branch
          %1424 = sbr.rel (%p1422) target = $region113
        $region112: #{gae_forward.6} parent=96 // pred_region
          _
        $region113: #{gae_forward.6} parent=96 // pred_fallthru
          _
      $region97: #{gae_forward.6} parent=5 // pred_fallthru
        _
      %p1425 = scmp.le.s32.totalorder 2, %s16
      // Predicated region
      $region114: #{gae_forward.6} parent=5 // pred_check
        %p1426 = pneg %p1425
      $region115: #{gae_forward.6} parent=5 // pred_check_branch
        %1428 = sbr.rel (%p1426) target = $region117
      $region116: #{gae_forward.6} parent=5 // pred_region
        %s1429 = ssub.s32 %s16, 2
        // Predicated region
        $region118: #{gae_forward.6} parent=116 // pred_check
          %p1430 = pneg %p289
        $region119: #{gae_forward.6} parent=116 // pred_check_branch
          %1432 = sbr.rel (%p1430) target = $region121
        $region120: #{gae_forward.6} parent=116 // pred_region
          %p1433 = scmp.lt.s32.totalorder %s27, 1
          %s1434 = scalar_select %p1433, %s27, 1
          %s1435 = smul.addr %s1434, 8
          %s1436 = scalar_lea.vmem %s10, %s1435
        $region121: #{gae_forward.6} parent=116 // pred_fallthru
          _
      $region117: #{gae_forward.6} parent=5 // pred_fallthru
        _
    $region6: #{gae_forward.6} parent=1 // loop_footer
      %s20 = sadd.s32 1, %s16
    $region7: #{gae_forward.6} parent=1 // loop_footer_branch
      %15 = sbr.rel target = $region3
    $region8: #{gae_forward.6} parent=1 // loop_exit
      _

</llo_original>
